<compile_context>
chip_gen: v6e
topology: v6e:2x2x1
jax: 0.10.0
libtpu: 0.0.40
codegen_flags: <defaults>
</compile_context>

<pallas_src>
import functools

import jax
import jax.numpy as jnp
from jax import lax
from jax.experimental import pallas as pl
from jax.experimental.pallas import tpu as pltpu
import numpy as np


def ers_kernel(x_ref, taps_ref, masks_ref, pw_ref, bias_ref, o_ref, *, W):
    """One batch chunk per grid step.

    x_ref    : (Bt, C, HW) input, H*W flattened onto the lane axis
    taps_ref : (C, 9)      depthwise 3x3 taps with BN1 scale folded in
    masks_ref: (9, HW)     per-tap edge-validity masks (pad=1 zeros + row wrap)
    pw_ref   : (C, C)      pointwise weight (BN2 scale folded into rows)
    bias_ref : (C, 2)      column 0 = BN1 bias, column 1 = BN2 bias
    o_ref    : (Bt, C, HW) output
    """
    hw = x_ref.shape[-1]
    b1 = bias_ref[:, 0:1]                                  # (C, 1)
    b2 = bias_ref[:, 1:2]                                  # (C, 1)
    pw = pw_ref[...]                                       # (C, C)

    for b in range(x_ref.shape[0]):                        # static, small batch tile
        x = x_ref[b]                                       # (C, HW) f32

        # --- depthwise 3x3 conv (BN1 scale folded into the taps) -------------
        # shifted[c, p] = x[c, p + dy*W + dx]; the (1, HW) masks zero both the
        # conv's zero padding and the flat-axis row wrap of the lane rotation.
        acc = x * taps_ref[:, 4:5]                         # centre tap: mask all-ones
        k = 0
        for dy in (-1, 0, 1):
            for dx in (-1, 0, 1):
                if dy == 0 and dx == 0:
                    k += 1
                    continue
                shift = (-(dy * W + dx)) % hw              # non-negative static rotate
                shifted = pltpu.roll(x, shift, 1)          # XLU lane rotate
                acc = acc + (shifted * taps_ref[:, k:k + 1]) * masks_ref[k:k + 1, :]
                k += 1

        # --- BN1 bias + LeakyReLU(0.1) ----------------------------------------
        y = acc + b1
        y = jnp.where(y >= 0, y, 0.1 * y)

        # --- pointwise 1x1 conv on the MXU (BN2 scale pre-folded into pw) -----
        z = jnp.dot(pw, y, preferred_element_type=jnp.float32)   # (C, HW)

        # --- BN2 bias, (dropout p=0 skipped), LeakyReLU(0.1), residual add ----
        z = z + b2
        z = jnp.where(z >= 0, z, 0.1 * z)
        o_ref[b] = (z + x).astype(o_ref.dtype)


def module_ers_pallas(x_nchw, dw_weight, pw_weight, bn1, bn2, eps=0.001,
                      batch_chunks=1):
    """Forward of moduleERS. x_nchw: (B, C, H, W) float32.

    batch_chunks: number of grid steps the batch is split into (1 = single
    step; 2 keeps both v7x TensorCores busy for larger batches).
    """
    B, C, H, W = x_nchw.shape
    HW = H * W
    assert B % batch_chunks == 0, "batch must divide evenly into chunks"
    Bt = B // batch_chunks

    # Free (metadata-only) reshape: no transpose, no padded HBM copy.
    x = x_nchw.reshape(B, C, HW)

    def fold(bn):
        gamma, beta, mean, var = bn
        scale = gamma / jnp.sqrt(var + eps)
        bias = beta - mean * scale
        return scale, bias

    s1, b1 = fold(bn1)
    s2, b2 = fold(bn2)

    # Depthwise taps with BN1 scale folded in, laid out (C, 9); tap index
    # k = (dy+1)*3 + (dx+1) matches the kernel's loop order.
    taps = (dw_weight[:, 0, :, :] * s1[:, None, None]).reshape(C, 9)

    # Per-tap validity masks over the flattened H*W axis (handles both the
    # zero padding of the 3x3/pad=1 conv and the row wrap of the flat rolls).
    iy = np.arange(H)
    jx = np.arange(W)
    m = []
    for dy in (-1, 0, 1):
        for dx in (-1, 0, 1):
            vi = ((iy + dy) >= 0) & ((iy + dy) < H)
            vj = ((jx + dx) >= 0) & ((jx + dx) < W)
            m.append(np.outer(vi, vj).reshape(HW))
    masks = jnp.asarray(np.stack(m), dtype=x.dtype)              # (9, HW)

    # Pointwise weight with BN2 scale folded into output rows; packed biases.
    pw = pw_weight[:, :, 0, 0] * s2[:, None]                     # (C_out, C_in)
    bias = jnp.stack([b1, b2], axis=1)                           # (C, 2)

    out = pl.pallas_call(
        functools.partial(ers_kernel, W=W),
        out_shape=jax.ShapeDtypeStruct((B, C, HW), x.dtype),
        grid=(batch_chunks,),
        in_specs=[
            pl.BlockSpec((Bt, C, HW), lambda g: (g, 0, 0)),
            pl.BlockSpec((C, 9), lambda g: (0, 0)),     # grid-invariant, resident
            pl.BlockSpec((9, HW), lambda g: (0, 0)),    # grid-invariant, resident
            pl.BlockSpec((C, C), lambda g: (0, 0)),     # grid-invariant, resident
            pl.BlockSpec((C, 2), lambda g: (0, 0)),     # grid-invariant, resident
        ],
        out_specs=pl.BlockSpec((Bt, C, HW), lambda g: (g, 0, 0)),
        compiler_params=pltpu.CompilerParams(
            dimension_semantics=("parallel",)),
    )(x, taps, masks, pw, bias)

    return out.reshape(B, C, H, W)


def module_ers_reference(x, dw_weight, pw_weight, bn1, bn2, eps=0.001):
    """Pure-JAX/XLA reference (NCHW), mirrors the PyTorch forward (eval-mode BN)."""
    C = x.shape[1]

    def leaky(v):
        return jnp.where(v >= 0, v, 0.1 * v)

    def bn(v, p):
        gamma, beta, mean, var = p
        r = lambda a: a.reshape(1, C, 1, 1)
        return (v - r(mean)) / jnp.sqrt(r(var) + eps) * r(gamma) + r(beta)

    y = lax.conv_general_dilated(
        x, dw_weight, window_strides=(1, 1), padding=((1, 1), (1, 1)),
        feature_group_count=C, dimension_numbers=("NCHW", "OIHW", "NCHW"))
    y = leaky(bn(y, bn1))
    y = lax.conv_general_dilated(
        y, pw_weight, window_strides=(1, 1), padding=((0, 0), (0, 0)),
        dimension_numbers=("NCHW", "OIHW", "NCHW"))
    y = bn(y, bn2)
    return leaky(y) + x


if __name__ == "__main__":
    B, C, H, W = 2, 32, 16, 16
    key = jax.random.PRNGKey(0)
    ks = jax.random.split(key, 12)

    x = jax.random.normal(ks[0], (B, C, H, W), dtype=jnp.float32)

    # Deterministic synthetic parameters (shapes from the module __init__, bias=False).
    dw_weight = 0.1 * jax.random.normal(ks[1], (C, 1, 3, 3), dtype=jnp.float32)
    pw_weight = 0.1 * jax.random.normal(ks[2], (C, C, 1, 1), dtype=jnp.float32)
    bn1 = (1.0 + 0.1 * jax.random.normal(ks[3], (C,), dtype=jnp.float32),     # gamma
           0.1 * jax.random.normal(ks[4], (C,), dtype=jnp.float32),           # beta
           0.1 * jax.random.normal(ks[5], (C,), dtype=jnp.float32),           # running_mean
           0.5 + jnp.abs(jax.random.normal(ks[6], (C,), dtype=jnp.float32)))  # running_var
    bn2 = (1.0 + 0.1 * jax.random.normal(ks[7], (C,), dtype=jnp.float32),
           0.1 * jax.random.normal(ks[8], (C,), dtype=jnp.float32),
           0.1 * jax.random.normal(ks[9], (C,), dtype=jnp.float32),
           0.5 + jnp.abs(jax.random.normal(ks[10], (C,), dtype=jnp.float32)))

    out = module_ers_pallas(x, dw_weight, pw_weight, bn1, bn2)
    out = jax.block_until_ready(out)

    ref = module_ers_reference(x, dw_weight, pw_weight, bn1, bn2)
    ref = jax.block_until_ready(ref)

    np.testing.assert_allclose(np.asarray(out), np.asarray(ref), atol=1e-4, rtol=1e-4)
    print("KERNEL_OK")
</pallas_src>

<mosaic_0001>
module attributes {stable_mosaic.version = 11 : i64} {
  func.func @ers_kernel(%arg0: i32, %arg1: memref<2x32x256xf32, #tpu.memory_space<vmem>>, %arg2: memref<32x9xf32, #tpu.memory_space<vmem>>, %arg3: memref<9x256xf32, #tpu.memory_space<vmem>>, %arg4: memref<32x32xf32, #tpu.memory_space<vmem>>, %arg5: memref<32x2xf32, #tpu.memory_space<vmem>>, %arg6: memref<2x32x256xf32, #tpu.memory_space<vmem>>) attributes {dimension_semantics = [#tpu.dimension_semantics<parallel>], iteration_bounds = array<i64: 1>, scalar_prefetch = 0 : i64, scratch_operands = 0 : i64, tpu.core_type = #tpu.core_type<tc>, window_params = [{transform_indices = @transform_0, window_bounds = array<i64: 2, 32, 256>}, {pipeline_mode = #tpu.pipeline_mode<synchronous>, transform_indices = @transform_1, window_bounds = array<i64: 32, 9>}, {pipeline_mode = #tpu.pipeline_mode<synchronous>, transform_indices = @transform_2, window_bounds = array<i64: 9, 256>}, {pipeline_mode = #tpu.pipeline_mode<synchronous>, transform_indices = @transform_3, window_bounds = array<i64: 32, 32>}, {pipeline_mode = #tpu.pipeline_mode<synchronous>, transform_indices = @transform_4, window_bounds = array<i64: 32, 2>}, {transform_indices = @transform_5, window_bounds = array<i64: 2, 32, 256>}]} {
    %c0 = arith.constant 0 : index
    %c0_0 = arith.constant 0 : index
    %0 = vector.load %arg5[%c0, %c0_0] : memref<32x2xf32, #tpu.memory_space<vmem>>, vector<32x1xf32>
    %c0_1 = arith.constant 0 : index
    %c1 = arith.constant 1 : index
    %1 = vector.load %arg5[%c0_1, %c1] : memref<32x2xf32, #tpu.memory_space<vmem>>, vector<32x1xf32>
    %c0_2 = arith.constant 0 : index
    %c0_3 = arith.constant 0 : index
    %2 = vector.load %arg4[%c0_2, %c0_3] : memref<32x32xf32, #tpu.memory_space<vmem>>, vector<32x32xf32>
    %c0_4 = arith.constant 0 : index
    %c0_5 = arith.constant 0 : index
    %c0_6 = arith.constant 0 : index
    %3 = vector.load %arg1[%c0_4, %c0_5, %c0_6] : memref<2x32x256xf32, #tpu.memory_space<vmem>>, vector<1x32x256xf32>
    %4 = vector.shape_cast %3 : vector<1x32x256xf32> to vector<32x256xf32>
    %c0_7 = arith.constant 0 : index
    %c4 = arith.constant 4 : index
    %5 = vector.load %arg2[%c0_7, %c4] : memref<32x9xf32, #tpu.memory_space<vmem>>, vector<32x1xf32>
    %6 = vector.broadcast %5 : vector<32x1xf32> to vector<32x256xf32>
    %7 = arith.mulf %4, %6 : vector<32x256xf32>
    %c17_i32 = arith.constant 17 : i32
    %8 = tpu.dynamic_rotate %4 by %c17_i32 dim 1 : vector<32x256xf32>, i32 -> vector<32x256xf32>
    %c0_8 = arith.constant 0 : index
    %c0_9 = arith.constant 0 : index
    %9 = vector.load %arg2[%c0_8, %c0_9] : memref<32x9xf32, #tpu.memory_space<vmem>>, vector<32x1xf32>
    %10 = vector.broadcast %9 : vector<32x1xf32> to vector<32x256xf32>
    %11 = arith.mulf %8, %10 : vector<32x256xf32>
    %c0_10 = arith.constant 0 : index
    %c0_11 = arith.constant 0 : index
    %12 = vector.load %arg3[%c0_10, %c0_11] : memref<9x256xf32, #tpu.memory_space<vmem>>, vector<1x256xf32>
    %13 = vector.broadcast %12 : vector<1x256xf32> to vector<32x256xf32>
    %14 = arith.mulf %11, %13 : vector<32x256xf32>
    %15 = arith.addf %7, %14 : vector<32x256xf32>
    %c16_i32 = arith.constant 16 : i32
    %16 = tpu.dynamic_rotate %4 by %c16_i32 dim 1 : vector<32x256xf32>, i32 -> vector<32x256xf32>
    %c0_12 = arith.constant 0 : index
    %c1_13 = arith.constant 1 : index
    %17 = vector.load %arg2[%c0_12, %c1_13] : memref<32x9xf32, #tpu.memory_space<vmem>>, vector<32x1xf32>
    %18 = vector.broadcast %17 : vector<32x1xf32> to vector<32x256xf32>
    %19 = arith.mulf %16, %18 : vector<32x256xf32>
    %c1_14 = arith.constant 1 : index
    %c0_15 = arith.constant 0 : index
    %20 = vector.load %arg3[%c1_14, %c0_15] : memref<9x256xf32, #tpu.memory_space<vmem>>, vector<1x256xf32>
    %21 = vector.broadcast %20 : vector<1x256xf32> to vector<32x256xf32>
    %22 = arith.mulf %19, %21 : vector<32x256xf32>
    %23 = arith.addf %15, %22 : vector<32x256xf32>
    %c15_i32 = arith.constant 15 : i32
    %24 = tpu.dynamic_rotate %4 by %c15_i32 dim 1 : vector<32x256xf32>, i32 -> vector<32x256xf32>
    %c0_16 = arith.constant 0 : index
    %c2 = arith.constant 2 : index
    %25 = vector.load %arg2[%c0_16, %c2] : memref<32x9xf32, #tpu.memory_space<vmem>>, vector<32x1xf32>
    %26 = vector.broadcast %25 : vector<32x1xf32> to vector<32x256xf32>
    %27 = arith.mulf %24, %26 : vector<32x256xf32>
    %c2_17 = arith.constant 2 : index
    %c0_18 = arith.constant 0 : index
    %28 = vector.load %arg3[%c2_17, %c0_18] : memref<9x256xf32, #tpu.memory_space<vmem>>, vector<1x256xf32>
    %29 = vector.broadcast %28 : vector<1x256xf32> to vector<32x256xf32>
    %30 = arith.mulf %27, %29 : vector<32x256xf32>
    %31 = arith.addf %23, %30 : vector<32x256xf32>
    %c1_i32 = arith.constant 1 : i32
    %32 = tpu.dynamic_rotate %4 by %c1_i32 dim 1 : vector<32x256xf32>, i32 -> vector<32x256xf32>
    %c0_19 = arith.constant 0 : index
    %c3 = arith.constant 3 : index
    %33 = vector.load %arg2[%c0_19, %c3] : memref<32x9xf32, #tpu.memory_space<vmem>>, vector<32x1xf32>
    %34 = vector.broadcast %33 : vector<32x1xf32> to vector<32x256xf32>
    %35 = arith.mulf %32, %34 : vector<32x256xf32>
    %c3_20 = arith.constant 3 : index
    %c0_21 = arith.constant 0 : index
    %36 = vector.load %arg3[%c3_20, %c0_21] : memref<9x256xf32, #tpu.memory_space<vmem>>, vector<1x256xf32>
    %37 = vector.broadcast %36 : vector<1x256xf32> to vector<32x256xf32>
    %38 = arith.mulf %35, %37 : vector<32x256xf32>
    %39 = arith.addf %31, %38 : vector<32x256xf32>
    %c255_i32 = arith.constant 255 : i32
    %40 = tpu.dynamic_rotate %4 by %c255_i32 dim 1 : vector<32x256xf32>, i32 -> vector<32x256xf32>
    %c0_22 = arith.constant 0 : index
    %c5 = arith.constant 5 : index
    %41 = vector.load %arg2[%c0_22, %c5] : memref<32x9xf32, #tpu.memory_space<vmem>>, vector<32x1xf32>
    %42 = vector.broadcast %41 : vector<32x1xf32> to vector<32x256xf32>
    %43 = arith.mulf %40, %42 : vector<32x256xf32>
    %c5_23 = arith.constant 5 : index
    %c0_24 = arith.constant 0 : index
    %44 = vector.load %arg3[%c5_23, %c0_24] : memref<9x256xf32, #tpu.memory_space<vmem>>, vector<1x256xf32>
    %45 = vector.broadcast %44 : vector<1x256xf32> to vector<32x256xf32>
    %46 = arith.mulf %43, %45 : vector<32x256xf32>
    %47 = arith.addf %39, %46 : vector<32x256xf32>
    %c241_i32 = arith.constant 241 : i32
    %48 = tpu.dynamic_rotate %4 by %c241_i32 dim 1 : vector<32x256xf32>, i32 -> vector<32x256xf32>
    %c0_25 = arith.constant 0 : index
    %c6 = arith.constant 6 : index
    %49 = vector.load %arg2[%c0_25, %c6] : memref<32x9xf32, #tpu.memory_space<vmem>>, vector<32x1xf32>
    %50 = vector.broadcast %49 : vector<32x1xf32> to vector<32x256xf32>
    %51 = arith.mulf %48, %50 : vector<32x256xf32>
    %c6_26 = arith.constant 6 : index
    %c0_27 = arith.constant 0 : index
    %52 = vector.load %arg3[%c6_26, %c0_27] : memref<9x256xf32, #tpu.memory_space<vmem>>, vector<1x256xf32>
    %53 = vector.broadcast %52 : vector<1x256xf32> to vector<32x256xf32>
    %54 = arith.mulf %51, %53 : vector<32x256xf32>
    %55 = arith.addf %47, %54 : vector<32x256xf32>
    %c240_i32 = arith.constant 240 : i32
    %56 = tpu.dynamic_rotate %4 by %c240_i32 dim 1 : vector<32x256xf32>, i32 -> vector<32x256xf32>
    %c0_28 = arith.constant 0 : index
    %c7 = arith.constant 7 : index
    %57 = vector.load %arg2[%c0_28, %c7] : memref<32x9xf32, #tpu.memory_space<vmem>>, vector<32x1xf32>
    %58 = vector.broadcast %57 : vector<32x1xf32> to vector<32x256xf32>
    %59 = arith.mulf %56, %58 : vector<32x256xf32>
    %c7_29 = arith.constant 7 : index
    %c0_30 = arith.constant 0 : index
    %60 = vector.load %arg3[%c7_29, %c0_30] : memref<9x256xf32, #tpu.memory_space<vmem>>, vector<1x256xf32>
    %61 = vector.broadcast %60 : vector<1x256xf32> to vector<32x256xf32>
    %62 = arith.mulf %59, %61 : vector<32x256xf32>
    %63 = arith.addf %55, %62 : vector<32x256xf32>
    %c239_i32 = arith.constant 239 : i32
    %64 = tpu.dynamic_rotate %4 by %c239_i32 dim 1 : vector<32x256xf32>, i32 -> vector<32x256xf32>
    %c0_31 = arith.constant 0 : index
    %c8 = arith.constant 8 : index
    %65 = vector.load %arg2[%c0_31, %c8] : memref<32x9xf32, #tpu.memory_space<vmem>>, vector<32x1xf32>
    %66 = vector.broadcast %65 : vector<32x1xf32> to vector<32x256xf32>
    %67 = arith.mulf %64, %66 : vector<32x256xf32>
    %c8_32 = arith.constant 8 : index
    %c0_33 = arith.constant 0 : index
    %68 = vector.load %arg3[%c8_32, %c0_33] : memref<9x256xf32, #tpu.memory_space<vmem>>, vector<1x256xf32>
    %69 = vector.broadcast %68 : vector<1x256xf32> to vector<32x256xf32>
    %70 = arith.mulf %67, %69 : vector<32x256xf32>
    %71 = arith.addf %63, %70 : vector<32x256xf32>
    %72 = vector.broadcast %0 : vector<32x1xf32> to vector<32x256xf32>
    %73 = arith.addf %71, %72 : vector<32x256xf32>
    %cst = arith.constant 0.000000e+00 : f32
    %74 = vector.broadcast %cst : f32 to vector<32x256xf32>
    %75 = arith.cmpf oge, %73, %74 : vector<32x256xf32>
    %cst_34 = arith.constant 1.000000e-01 : f32
    %76 = vector.broadcast %cst_34 : f32 to vector<32x256xf32>
    %77 = arith.mulf %76, %73 : vector<32x256xf32>
    %78 = arith.select %75, %73, %77 : vector<32x256xi1>, vector<32x256xf32>
    %cst_35 = arith.constant dense<0.000000e+00> : vector<32x256xf32>
    %79 = tpu.matmul %2, %78, %cst_35 {dimension_numbers = #tpu.dot_dimension_numbers<[1], [0], [0], [1], [0, 0, 1, 1], [], []>} : vector<32x32xf32>, vector<32x256xf32>, vector<32x256xf32> -> vector<32x256xf32>
    %80 = vector.broadcast %1 : vector<32x1xf32> to vector<32x256xf32>
    %81 = arith.addf %79, %80 : vector<32x256xf32>
    %cst_36 = arith.constant 0.000000e+00 : f32
    %82 = vector.broadcast %cst_36 : f32 to vector<32x256xf32>
    %83 = arith.cmpf oge, %81, %82 : vector<32x256xf32>
    %cst_37 = arith.constant 1.000000e-01 : f32
    %84 = vector.broadcast %cst_37 : f32 to vector<32x256xf32>
    %85 = arith.mulf %84, %81 : vector<32x256xf32>
    %86 = arith.select %83, %81, %85 : vector<32x256xi1>, vector<32x256xf32>
    %87 = arith.addf %86, %4 : vector<32x256xf32>
    %c0_38 = arith.constant 0 : index
    %c0_39 = arith.constant 0 : index
    %c0_40 = arith.constant 0 : index
    %88 = vector.load %arg6[%c0_38, %c0_39, %c0_40] : memref<2x32x256xf32, #tpu.memory_space<vmem>>, vector<1x32x256xf32>
    %89 = vector.shape_cast %88 : vector<1x32x256xf32> to vector<32x256xf32>
    %90 = vector.shape_cast %87 : vector<32x256xf32> to vector<1x32x256xf32>
    tpu.vector_store %arg6[%c0_38, %c0_39, %c0_40], %90 {strides = array<i32>} : memref<2x32x256xf32, #tpu.memory_space<vmem>>, vector<1x32x256xf32>,
    %c1_41 = arith.constant 1 : index
    %c0_42 = arith.constant 0 : index
    %c0_43 = arith.constant 0 : index
    %91 = vector.load %arg1[%c1_41, %c0_42, %c0_43] : memref<2x32x256xf32, #tpu.memory_space<vmem>>, vector<1x32x256xf32>
    %92 = vector.shape_cast %91 : vector<1x32x256xf32> to vector<32x256xf32>
    %c0_44 = arith.constant 0 : index
    %c4_45 = arith.constant 4 : index
    %93 = vector.load %arg2[%c0_44, %c4_45] : memref<32x9xf32, #tpu.memory_space<vmem>>, vector<32x1xf32>
    %94 = vector.broadcast %93 : vector<32x1xf32> to vector<32x256xf32>
    %95 = arith.mulf %92, %94 : vector<32x256xf32>
    %c17_i32_46 = arith.constant 17 : i32
    %96 = tpu.dynamic_rotate %92 by %c17_i32_46 dim 1 : vector<32x256xf32>, i32 -> vector<32x256xf32>
    %c0_47 = arith.constant 0 : index
    %c0_48 = arith.constant 0 : index
    %97 = vector.load %arg2[%c0_47, %c0_48] : memref<32x9xf32, #tpu.memory_space<vmem>>, vector<32x1xf32>
    %98 = vector.broadcast %97 : vector<32x1xf32> to vector<32x256xf32>
    %99 = arith.mulf %96, %98 : vector<32x256xf32>
    %c0_49 = arith.constant 0 : index
    %c0_50 = arith.constant 0 : index
    %100 = vector.load %arg3[%c0_49, %c0_50] : memref<9x256xf32, #tpu.memory_space<vmem>>, vector<1x256xf32>
    %101 = vector.broadcast %100 : vector<1x256xf32> to vector<32x256xf32>
    %102 = arith.mulf %99, %101 : vector<32x256xf32>
    %103 = arith.addf %95, %102 : vector<32x256xf32>
    %c16_i32_51 = arith.constant 16 : i32
    %104 = tpu.dynamic_rotate %92 by %c16_i32_51 dim 1 : vector<32x256xf32>, i32 -> vector<32x256xf32>
    %c0_52 = arith.constant 0 : index
    %c1_53 = arith.constant 1 : index
    %105 = vector.load %arg2[%c0_52, %c1_53] : memref<32x9xf32, #tpu.memory_space<vmem>>, vector<32x1xf32>
    %106 = vector.broadcast %105 : vector<32x1xf32> to vector<32x256xf32>
    %107 = arith.mulf %104, %106 : vector<32x256xf32>
    %c1_54 = arith.constant 1 : index
    %c0_55 = arith.constant 0 : index
    %108 = vector.load %arg3[%c1_54, %c0_55] : memref<9x256xf32, #tpu.memory_space<vmem>>, vector<1x256xf32>
    %109 = vector.broadcast %108 : vector<1x256xf32> to vector<32x256xf32>
    %110 = arith.mulf %107, %109 : vector<32x256xf32>
    %111 = arith.addf %103, %110 : vector<32x256xf32>
    %c15_i32_56 = arith.constant 15 : i32
    %112 = tpu.dynamic_rotate %92 by %c15_i32_56 dim 1 : vector<32x256xf32>, i32 -> vector<32x256xf32>
    %c0_57 = arith.constant 0 : index
    %c2_58 = arith.constant 2 : index
    %113 = vector.load %arg2[%c0_57, %c2_58] : memref<32x9xf32, #tpu.memory_space<vmem>>, vector<32x1xf32>
    %114 = vector.broadcast %113 : vector<32x1xf32> to vector<32x256xf32>
    %115 = arith.mulf %112, %114 : vector<32x256xf32>
    %c2_59 = arith.constant 2 : index
    %c0_60 = arith.constant 0 : index
    %116 = vector.load %arg3[%c2_59, %c0_60] : memref<9x256xf32, #tpu.memory_space<vmem>>, vector<1x256xf32>
    %117 = vector.broadcast %116 : vector<1x256xf32> to vector<32x256xf32>
    %118 = arith.mulf %115, %117 : vector<32x256xf32>
    %119 = arith.addf %111, %118 : vector<32x256xf32>
    %c1_i32_61 = arith.constant 1 : i32
    %120 = tpu.dynamic_rotate %92 by %c1_i32_61 dim 1 : vector<32x256xf32>, i32 -> vector<32x256xf32>
    %c0_62 = arith.constant 0 : index
    %c3_63 = arith.constant 3 : index
    %121 = vector.load %arg2[%c0_62, %c3_63] : memref<32x9xf32, #tpu.memory_space<vmem>>, vector<32x1xf32>
    %122 = vector.broadcast %121 : vector<32x1xf32> to vector<32x256xf32>
    %123 = arith.mulf %120, %122 : vector<32x256xf32>
    %c3_64 = arith.constant 3 : index
    %c0_65 = arith.constant 0 : index
    %124 = vector.load %arg3[%c3_64, %c0_65] : memref<9x256xf32, #tpu.memory_space<vmem>>, vector<1x256xf32>
    %125 = vector.broadcast %124 : vector<1x256xf32> to vector<32x256xf32>
    %126 = arith.mulf %123, %125 : vector<32x256xf32>
    %127 = arith.addf %119, %126 : vector<32x256xf32>
    %c255_i32_66 = arith.constant 255 : i32
    %128 = tpu.dynamic_rotate %92 by %c255_i32_66 dim 1 : vector<32x256xf32>, i32 -> vector<32x256xf32>
    %c0_67 = arith.constant 0 : index
    %c5_68 = arith.constant 5 : index
    %129 = vector.load %arg2[%c0_67, %c5_68] : memref<32x9xf32, #tpu.memory_space<vmem>>, vector<32x1xf32>
    %130 = vector.broadcast %129 : vector<32x1xf32> to vector<32x256xf32>
    %131 = arith.mulf %128, %130 : vector<32x256xf32>
    %c5_69 = arith.constant 5 : index
    %c0_70 = arith.constant 0 : index
    %132 = vector.load %arg3[%c5_69, %c0_70] : memref<9x256xf32, #tpu.memory_space<vmem>>, vector<1x256xf32>
    %133 = vector.broadcast %132 : vector<1x256xf32> to vector<32x256xf32>
    %134 = arith.mulf %131, %133 : vector<32x256xf32>
    %135 = arith.addf %127, %134 : vector<32x256xf32>
    %c241_i32_71 = arith.constant 241 : i32
    %136 = tpu.dynamic_rotate %92 by %c241_i32_71 dim 1 : vector<32x256xf32>, i32 -> vector<32x256xf32>
    %c0_72 = arith.constant 0 : index
    %c6_73 = arith.constant 6 : index
    %137 = vector.load %arg2[%c0_72, %c6_73] : memref<32x9xf32, #tpu.memory_space<vmem>>, vector<32x1xf32>
    %138 = vector.broadcast %137 : vector<32x1xf32> to vector<32x256xf32>
    %139 = arith.mulf %136, %138 : vector<32x256xf32>
    %c6_74 = arith.constant 6 : index
    %c0_75 = arith.constant 0 : index
    %140 = vector.load %arg3[%c6_74, %c0_75] : memref<9x256xf32, #tpu.memory_space<vmem>>, vector<1x256xf32>
    %141 = vector.broadcast %140 : vector<1x256xf32> to vector<32x256xf32>
    %142 = arith.mulf %139, %141 : vector<32x256xf32>
    %143 = arith.addf %135, %142 : vector<32x256xf32>
    %c240_i32_76 = arith.constant 240 : i32
    %144 = tpu.dynamic_rotate %92 by %c240_i32_76 dim 1 : vector<32x256xf32>, i32 -> vector<32x256xf32>
    %c0_77 = arith.constant 0 : index
    %c7_78 = arith.constant 7 : index
    %145 = vector.load %arg2[%c0_77, %c7_78] : memref<32x9xf32, #tpu.memory_space<vmem>>, vector<32x1xf32>
    %146 = vector.broadcast %145 : vector<32x1xf32> to vector<32x256xf32>
    %147 = arith.mulf %144, %146 : vector<32x256xf32>
    %c7_79 = arith.constant 7 : index
    %c0_80 = arith.constant 0 : index
    %148 = vector.load %arg3[%c7_79, %c0_80] : memref<9x256xf32, #tpu.memory_space<vmem>>, vector<1x256xf32>
    %149 = vector.broadcast %148 : vector<1x256xf32> to vector<32x256xf32>
    %150 = arith.mulf %147, %149 : vector<32x256xf32>
    %151 = arith.addf %143, %150 : vector<32x256xf32>
    %c239_i32_81 = arith.constant 239 : i32
    %152 = tpu.dynamic_rotate %92 by %c239_i32_81 dim 1 : vector<32x256xf32>, i32 -> vector<32x256xf32>
    %c0_82 = arith.constant 0 : index
    %c8_83 = arith.constant 8 : index
    %153 = vector.load %arg2[%c0_82, %c8_83] : memref<32x9xf32, #tpu.memory_space<vmem>>, vector<32x1xf32>
    %154 = vector.broadcast %153 : vector<32x1xf32> to vector<32x256xf32>
    %155 = arith.mulf %152, %154 : vector<32x256xf32>
    %c8_84 = arith.constant 8 : index
    %c0_85 = arith.constant 0 : index
    %156 = vector.load %arg3[%c8_84, %c0_85] : memref<9x256xf32, #tpu.memory_space<vmem>>, vector<1x256xf32>
    %157 = vector.broadcast %156 : vector<1x256xf32> to vector<32x256xf32>
    %158 = arith.mulf %155, %157 : vector<32x256xf32>
    %159 = arith.addf %151, %158 : vector<32x256xf32>
    %160 = vector.broadcast %0 : vector<32x1xf32> to vector<32x256xf32>
    %161 = arith.addf %159, %160 : vector<32x256xf32>
    %cst_86 = arith.constant 0.000000e+00 : f32
    %162 = vector.broadcast %cst_86 : f32 to vector<32x256xf32>
    %163 = arith.cmpf oge, %161, %162 : vector<32x256xf32>
    %cst_87 = arith.constant 1.000000e-01 : f32
    %164 = vector.broadcast %cst_87 : f32 to vector<32x256xf32>
    %165 = arith.mulf %164, %161 : vector<32x256xf32>
    %166 = arith.select %163, %161, %165 : vector<32x256xi1>, vector<32x256xf32>
    %cst_88 = arith.constant dense<0.000000e+00> : vector<32x256xf32>
    %167 = tpu.matmul %2, %166, %cst_88 {dimension_numbers = #tpu.dot_dimension_numbers<[1], [0], [0], [1], [0, 0, 1, 1], [], []>} : vector<32x32xf32>, vector<32x256xf32>, vector<32x256xf32> -> vector<32x256xf32>
    %168 = vector.broadcast %1 : vector<32x1xf32> to vector<32x256xf32>
    %169 = arith.addf %167, %168 : vector<32x256xf32>
    %cst_89 = arith.constant 0.000000e+00 : f32
    %170 = vector.broadcast %cst_89 : f32 to vector<32x256xf32>
    %171 = arith.cmpf oge, %169, %170 : vector<32x256xf32>
    %cst_90 = arith.constant 1.000000e-01 : f32
    %172 = vector.broadcast %cst_90 : f32 to vector<32x256xf32>
    %173 = arith.mulf %172, %169 : vector<32x256xf32>
    %174 = arith.select %171, %169, %173 : vector<32x256xi1>, vector<32x256xf32>
    %175 = arith.addf %174, %92 : vector<32x256xf32>
    %c1_91 = arith.constant 1 : index
    %c0_92 = arith.constant 0 : index
    %c0_93 = arith.constant 0 : index
    %176 = vector.load %arg6[%c1_91, %c0_92, %c0_93] : memref<2x32x256xf32, #tpu.memory_space<vmem>>, vector<1x32x256xf32>
    %177 = vector.shape_cast %176 : vector<1x32x256xf32> to vector<32x256xf32>
    %178 = vector.shape_cast %175 : vector<32x256xf32> to vector<1x32x256xf32>
    tpu.vector_store %arg6[%c1_91, %c0_92, %c0_93], %178 {strides = array<i32>} : memref<2x32x256xf32, #tpu.memory_space<vmem>>, vector<1x32x256xf32>,
    return
  }
  func.func @transform_0(%arg0: i32) -> (i32, i32, i32) {
    %c0_i32 = arith.constant 0 : i32
    %c0_i32_0 = arith.constant 0 : i32
    %c0_i32_1 = arith.constant 0 : i32
    return %arg0, %c0_i32, %c0_i32_0 : i32, i32, i32
  }
  func.func @transform_1(%arg0: i32) -> (i32, i32) {
    %c0_i32 = arith.constant 0 : i32
    %c0_i32_0 = arith.constant 0 : i32
    %c0_i32_1 = arith.constant 0 : i32
    return %c0_i32, %c0_i32_0 : i32, i32
  }
  func.func @transform_2(%arg0: i32) -> (i32, i32) {
    %c0_i32 = arith.constant 0 : i32
    %c0_i32_0 = arith.constant 0 : i32
    %c0_i32_1 = arith.constant 0 : i32
    return %c0_i32, %c0_i32_0 : i32, i32
  }
  func.func @transform_3(%arg0: i32) -> (i32, i32) {
    %c0_i32 = arith.constant 0 : i32
    %c0_i32_0 = arith.constant 0 : i32
    %c0_i32_1 = arith.constant 0 : i32
    return %c0_i32, %c0_i32_0 : i32, i32
  }
  func.func @transform_4(%arg0: i32) -> (i32, i32) {
    %c0_i32 = arith.constant 0 : i32
    %c0_i32_0 = arith.constant 0 : i32
    %c0_i32_1 = arith.constant 0 : i32
    return %c0_i32, %c0_i32_0 : i32, i32
  }
  func.func @transform_5(%arg0: i32) -> (i32, i32, i32) {
    %c0_i32 = arith.constant 0 : i32
    %c0_i32_0 = arith.constant 0 : i32
    %c0_i32_1 = arith.constant 0 : i32
    return %arg0, %c0_i32, %c0_i32_0 : i32, i32, i32
  }
}

</mosaic_0001>

<llo_original>
// kernel: tpu_custom_call.1
$region0: #{tpu_custom_call.1}
  #allocation0 [shape = 'u32[]', space=smem, size = 0x4, offset = 0x4, fixed_abs, tag = 'smem constant byte address 0x4 - core index']
  #allocation1 [shape = 'u32[144,128]{1,0:T(1,128)}', space=vmem, size = 0x12000, scoped, tag = 'internal scratch']
  %s0 = inlined_call_operand.hbm [shape: f32[2,32,256], index: 0, kind: input, shape index: {}]
  %s1 = inlined_call_operand.vmem [shape: f32[32,9], index: 1, kind: input, shape index: {}]
  %s2 = inlined_call_operand.vmem [shape: f32[9,256], index: 2, kind: input, shape index: {}]
  %s3 = inlined_call_operand.vmem [shape: f32[32,32], index: 3, kind: input, shape index: {}]
  %s4 = inlined_call_operand.vmem [shape: f32[32,2], index: 4, kind: input, shape index: {}]
  %s5 = inlined_call_operand.hbm [shape: f32[2,32,256], index: 5, kind: output, shape index: {}]
  %s6 = sld [smem:[#allocation0]]
  $region34: #{tpu_custom_call.1} parent=0
    _
  %s8 = ssub.s32 1, %s6
  %s9 = scalar_select 0, %s8, %s6
  $region1: #{tpu_custom_call.1} parent=0
    #allocation2 [shape = 'u8[65536]{0}', space=vmem, size = 0x10000, scoped, tag = 'input window, operand 0, single buffered']
    #allocation3 [shape = 's32[1]{0}', space=sflag, size = 0x4, scoped, tag = 'scoped memory for tpu_custom_call.1']
    #allocation4 [shape = 's32[1]{0}', space=sflag, size = 0x4, scoped, tag = 'scoped memory for tpu_custom_call.1']
    #allocation5 [shape = 'u8[65536]{0}', space=vmem, size = 0x10000, scoped, tag = 'output window, operand 0, single buffered']
    %10 = vsyncpa [#allocation3], 0
    %11 = vsyncpa [#allocation4], 0
    // Predicated region
    $region2: #{tpu_custom_call.1} parent=1 // pred_check
      _
    $region3: #{tpu_custom_call.1} parent=1 // pred_check_branch
      %13 = sbr.rel (0) target = $region5
    $region4: #{tpu_custom_call.1} parent=1 // pred_region
      %s15 = ssub.s32 2048, 2048
      %16 = vsyncadd [#allocation3], %s15
      %s17 = sshll.u32 [#allocation2], 4
      %s18 = int_to_ptr.vmem [resolvable:$true] %s17
      %23 = dma.hbm_to_vmem [thread:$0]  %s0, 2048, %s18, [#allocation3], 256, 256, 16
    $region5: #{tpu_custom_call.1} parent=1 // pred_fallthru
      _
    // Predicated region
    $region6: #{tpu_custom_call.1} parent=1 // pred_check
      _
    $region7: #{tpu_custom_call.1} parent=1 // pred_check_branch
      %25 = sbr.rel (0) target = $region9
    $region8: #{tpu_custom_call.1} parent=1 // pred_region
      _
    $region9: #{tpu_custom_call.1} parent=1 // pred_fallthru
      _
    // Predicated region
    $region10: #{tpu_custom_call.1} parent=1 // pred_check
      _
    $region11: #{tpu_custom_call.1} parent=1 // pred_check_branch
      %27 = sbr.rel (0) target = $region13
    $region12: #{tpu_custom_call.1} parent=1 // pred_region
      _
    $region13: #{tpu_custom_call.1} parent=1 // pred_fallthru
      _
    // Predicated region
    $region14: #{tpu_custom_call.1} parent=1 // pred_check
      _
    $region15: #{tpu_custom_call.1} parent=1 // pred_check_branch
      %29 = sbr.rel (0) target = $region17
    $region16: #{tpu_custom_call.1} parent=1 // pred_region
      _
    $region17: #{tpu_custom_call.1} parent=1 // pred_fallthru
      _
    // Predicated region
    $region18: #{tpu_custom_call.1} parent=1 // pred_check
      _
    $region19: #{tpu_custom_call.1} parent=1 // pred_check_branch
      %31 = sbr.rel (0) target = $region21
    $region20: #{tpu_custom_call.1} parent=1 // pred_region
      _
    $region21: #{tpu_custom_call.1} parent=1 // pred_fallthru
      _
    // Predicated region
    $region22: #{tpu_custom_call.1} parent=1 // pred_check
      _
    $region23: #{tpu_custom_call.1} parent=1 // pred_check_branch
      %33 = sbr.rel (0) target = $region25
    $region24: #{tpu_custom_call.1} parent=1 // pred_region
      %34 = dma.done [#allocation3], 2048
    $region25: #{tpu_custom_call.1} parent=1 // pred_fallthru
      _
    %v35 = vld [vmem:[%s4] sm:$0xff]
    %v36 = vld [vmem:[%s4 + $0x8] sm:$0xff]
    %v37 = vld [vmem:[%s4 + $0x10] sm:$0xff]
    %v38 = vld [vmem:[%s4 + $0x18] sm:$0xff]
    %v39 = vld [vmem:[%s3] sm:$0xff]
    %v40 = vld [vmem:[%s3 + $0x8] sm:$0xff]
    %v41 = vld [vmem:[%s3 + $0x10] sm:$0xff]
    %v42 = vld [vmem:[%s3 + $0x18] sm:$0xff]
    %v43 = vld [vmem:[#allocation2] sm:$0xff]
    %v44 = vld [vmem:[#allocation2 + $0x8] sm:$0xff]
    %v45 = vld [vmem:[#allocation2 + $0x10] sm:$0xff]
    %v46 = vld [vmem:[#allocation2 + $0x18] sm:$0xff]
    %v47 = vld [vmem:[#allocation2 + $0x20] sm:$0xff]
    %v48 = vld [vmem:[#allocation2 + $0x28] sm:$0xff]
    %v49 = vld [vmem:[#allocation2 + $0x30] sm:$0xff]
    %v50 = vld [vmem:[#allocation2 + $0x38] sm:$0xff]
    %v51 = vld [vmem:[%s1] sm:$0xff]
    %v52 = vld [vmem:[%s1 + $0x8] sm:$0xff]
    %v53 = vld [vmem:[%s1 + $0x10] sm:$0xff]
    %v54 = vld [vmem:[%s1 + $0x18] sm:$0xff]
    %56 = vset.pattern.permute.xlu0 4
    %57 = vperm.xlu0 %56, %v51
    %v58 = vpop.permute.xlu0 %57
    %61 = vset.pattern.permute.xlu0 4
    %62 = vperm.xlu0 %61, %v52
    %v63 = vpop.permute.xlu0 %62
    %66 = vset.pattern.permute.xlu0 4
    %67 = vperm.xlu0 %66, %v53
    %v68 = vpop.permute.xlu0 %67
    %71 = vset.pattern.permute.xlu0 4
    %72 = vperm.xlu0 %71, %v54
    %v73 = vpop.permute.xlu0 %72
    %v75 = vmul.f32 %v43, %v58
    %v76 = vmul.f32 %v44, %v58
    %v77 = vmul.f32 %v45, %v63
    %v78 = vmul.f32 %v46, %v63
    %v79 = vmul.f32 %v47, %v68
    %v80 = vmul.f32 %v48, %v68
    %v81 = vmul.f32 %v49, %v73
    %v82 = vmul.f32 %v50, %v73
    %83 = vrot.lane.b32.xlu0 %v43, 17
    %v84 = vpop.permute.xlu0 %83
    %85 = vrot.lane.b32.xlu0 %v45, 17
    %v86 = vpop.permute.xlu0 %85
    %87 = vrot.lane.b32.xlu0 %v47, 17
    %v88 = vpop.permute.xlu0 %87
    %89 = vrot.lane.b32.xlu0 %v49, 17
    %v90 = vpop.permute.xlu0 %89
    %91 = vrot.lane.b32.xlu0 %v44, 17
    %v92 = vpop.permute.xlu0 %91
    %93 = vrot.lane.b32.xlu0 %v46, 17
    %v94 = vpop.permute.xlu0 %93
    %95 = vrot.lane.b32.xlu0 %v48, 17
    %v96 = vpop.permute.xlu0 %95
    %97 = vrot.lane.b32.xlu0 %v50, 17
    %v98 = vpop.permute.xlu0 %97
    %v99 = vlaneseq
    %v100 = vand.u32 %v99, 127
    %vm101 = vcmp.lt.s32.totalorder %v100, 17
    %v102 = vsel %vm101, %v84, %v92
    %v103 = vsel %vm101, %v86, %v94
    %v104 = vsel %vm101, %v88, %v96
    %v105 = vsel %vm101, %v90, %v98
    %v106 = vsel %vm101, %v92, %v84
    %v107 = vsel %vm101, %v94, %v86
    %v108 = vsel %vm101, %v96, %v88
    %v109 = vsel %vm101, %v98, %v90
    %110 = vset.pattern.permute.xlu0 0
    %111 = vperm.xlu0 %110, %v51
    %v112 = vpop.permute.xlu0 %111
    %114 = vset.pattern.permute.xlu0 0
    %115 = vperm.xlu0 %114, %v52
    %v116 = vpop.permute.xlu0 %115
    %118 = vset.pattern.permute.xlu0 0
    %119 = vperm.xlu0 %118, %v53
    %v120 = vpop.permute.xlu0 %119
    %122 = vset.pattern.permute.xlu0 0
    %123 = vperm.xlu0 %122, %v54
    %v124 = vpop.permute.xlu0 %123
    %v126 = vmul.f32 %v106, %v112
    %v127 = vmul.f32 %v102, %v112
    %v128 = vmul.f32 %v107, %v116
    %v129 = vmul.f32 %v103, %v116
    %v130 = vmul.f32 %v108, %v120
    %v131 = vmul.f32 %v104, %v120
    %v132 = vmul.f32 %v109, %v124
    %v133 = vmul.f32 %v105, %v124
    %v134 = vld [vmem:[%s2] ss:$8 sm:$0x3]
    %v136 = vlaneseq
    %v137 = vshrl.u32 %v136, 7
    %v138 = vsub.s32 0, %v137
    %v139 = vrot.slane %v134, %v138
    %v140 = vlaneseq
    %v141 = vshrl.u32 %v140, 7
    %v142 = vsub.s32 1, %v141
    %v143 = vrot.slane %v134, %v142
    %v146 = vmul.f32 %v126, %v139
    %v147 = vmul.f32 %v127, %v143
    %v148 = vmul.f32 %v128, %v139
    %v149 = vmul.f32 %v129, %v143
    %v150 = vmul.f32 %v130, %v139
    %v151 = vmul.f32 %v131, %v143
    %v152 = vmul.f32 %v132, %v139
    %v153 = vmul.f32 %v133, %v143
    %v154 = vadd.f32 %v75, %v146
    %v155 = vadd.f32 %v76, %v147
    %v156 = vadd.f32 %v77, %v148
    %v157 = vadd.f32 %v78, %v149
    %v158 = vadd.f32 %v79, %v150
    %v159 = vadd.f32 %v80, %v151
    %v160 = vadd.f32 %v81, %v152
    %v161 = vadd.f32 %v82, %v153
    %162 = vrot.lane.b32.xlu0 %v43, 16
    %v163 = vpop.permute.xlu0 %162
    %164 = vrot.lane.b32.xlu0 %v45, 16
    %v165 = vpop.permute.xlu0 %164
    %166 = vrot.lane.b32.xlu0 %v47, 16
    %v167 = vpop.permute.xlu0 %166
    %168 = vrot.lane.b32.xlu0 %v49, 16
    %v169 = vpop.permute.xlu0 %168
    %170 = vrot.lane.b32.xlu0 %v44, 16
    %v171 = vpop.permute.xlu0 %170
    %172 = vrot.lane.b32.xlu0 %v46, 16
    %v173 = vpop.permute.xlu0 %172
    %174 = vrot.lane.b32.xlu0 %v48, 16
    %v175 = vpop.permute.xlu0 %174
    %176 = vrot.lane.b32.xlu0 %v50, 16
    %v177 = vpop.permute.xlu0 %176
    %vm178 = vcmp.lt.s32.totalorder %v100, 16
    %v179 = vsel %vm178, %v163, %v171
    %v180 = vsel %vm178, %v165, %v173
    %v181 = vsel %vm178, %v167, %v175
    %v182 = vsel %vm178, %v169, %v177
    %v183 = vsel %vm178, %v171, %v163
    %v184 = vsel %vm178, %v173, %v165
    %v185 = vsel %vm178, %v175, %v167
    %v186 = vsel %vm178, %v177, %v169
    %187 = vset.pattern.permute.xlu0 1
    %188 = vperm.xlu0 %187, %v51
    %v189 = vpop.permute.xlu0 %188
    %191 = vset.pattern.permute.xlu0 1
    %192 = vperm.xlu0 %191, %v52
    %v193 = vpop.permute.xlu0 %192
    %195 = vset.pattern.permute.xlu0 1
    %196 = vperm.xlu0 %195, %v53
    %v197 = vpop.permute.xlu0 %196
    %199 = vset.pattern.permute.xlu0 1
    %200 = vperm.xlu0 %199, %v54
    %v201 = vpop.permute.xlu0 %200
    %v203 = vmul.f32 %v183, %v189
    %v204 = vmul.f32 %v179, %v189
    %v205 = vmul.f32 %v184, %v193
    %v206 = vmul.f32 %v180, %v193
    %v207 = vmul.f32 %v185, %v197
    %v208 = vmul.f32 %v181, %v197
    %v209 = vmul.f32 %v186, %v201
    %v210 = vmul.f32 %v182, %v201
    %s211 = scalar_lea.vmem %s2, 1
    %v212 = vld [vmem:[%s211] ss:$8 sm:$0x3]
    %v214 = vlaneseq
    %v215 = vshrl.u32 %v214, 7
    %v216 = vsub.s32 0, %v215
    %v217 = vrot.slane %v212, %v216
    %v218 = vlaneseq
    %v219 = vshrl.u32 %v218, 7
    %v220 = vsub.s32 1, %v219
    %v221 = vrot.slane %v212, %v220
    %v224 = vmul.f32 %v203, %v217
    %v225 = vmul.f32 %v204, %v221
    %v226 = vmul.f32 %v205, %v217
    %v227 = vmul.f32 %v206, %v221
    %v228 = vmul.f32 %v207, %v217
    %v229 = vmul.f32 %v208, %v221
    %v230 = vmul.f32 %v209, %v217
    %v231 = vmul.f32 %v210, %v221
    %v232 = vadd.f32 %v154, %v224
    %v233 = vadd.f32 %v155, %v225
    %v234 = vadd.f32 %v156, %v226
    %v235 = vadd.f32 %v157, %v227
    %v236 = vadd.f32 %v158, %v228
    %v237 = vadd.f32 %v159, %v229
    %v238 = vadd.f32 %v160, %v230
    %v239 = vadd.f32 %v161, %v231
    %240 = vrot.lane.b32.xlu0 %v43, 15
    %v241 = vpop.permute.xlu0 %240
    %242 = vrot.lane.b32.xlu0 %v45, 15
    %v243 = vpop.permute.xlu0 %242
    %244 = vrot.lane.b32.xlu0 %v47, 15
    %v245 = vpop.permute.xlu0 %244
    %246 = vrot.lane.b32.xlu0 %v49, 15
    %v247 = vpop.permute.xlu0 %246
    %248 = vrot.lane.b32.xlu0 %v44, 15
    %v249 = vpop.permute.xlu0 %248
    %250 = vrot.lane.b32.xlu0 %v46, 15
    %v251 = vpop.permute.xlu0 %250
    %252 = vrot.lane.b32.xlu0 %v48, 15
    %v253 = vpop.permute.xlu0 %252
    %254 = vrot.lane.b32.xlu0 %v50, 15
    %v255 = vpop.permute.xlu0 %254
    %vm256 = vcmp.lt.s32.totalorder %v100, 15
    %v257 = vsel %vm256, %v241, %v249
    %v258 = vsel %vm256, %v243, %v251
    %v259 = vsel %vm256, %v245, %v253
    %v260 = vsel %vm256, %v247, %v255
    %v261 = vsel %vm256, %v249, %v241
    %v262 = vsel %vm256, %v251, %v243
    %v263 = vsel %vm256, %v253, %v245
    %v264 = vsel %vm256, %v255, %v247
    %265 = vset.pattern.permute.xlu0 2
    %266 = vperm.xlu0 %265, %v51
    %v267 = vpop.permute.xlu0 %266
    %269 = vset.pattern.permute.xlu0 2
    %270 = vperm.xlu0 %269, %v52
    %v271 = vpop.permute.xlu0 %270
    %273 = vset.pattern.permute.xlu0 2
    %274 = vperm.xlu0 %273, %v53
    %v275 = vpop.permute.xlu0 %274
    %277 = vset.pattern.permute.xlu0 2
    %278 = vperm.xlu0 %277, %v54
    %v279 = vpop.permute.xlu0 %278
    %v281 = vmul.f32 %v261, %v267
    %v282 = vmul.f32 %v257, %v267
    %v283 = vmul.f32 %v262, %v271
    %v284 = vmul.f32 %v258, %v271
    %v285 = vmul.f32 %v263, %v275
    %v286 = vmul.f32 %v259, %v275
    %v287 = vmul.f32 %v264, %v279
    %v288 = vmul.f32 %v260, %v279
    %s289 = scalar_lea.vmem %s2, 2
    %v290 = vld [vmem:[%s289] ss:$8 sm:$0x3]
    %v292 = vlaneseq
    %v293 = vshrl.u32 %v292, 7
    %v294 = vsub.s32 0, %v293
    %v295 = vrot.slane %v290, %v294
    %v296 = vlaneseq
    %v297 = vshrl.u32 %v296, 7
    %v298 = vsub.s32 1, %v297
    %v299 = vrot.slane %v290, %v298
    %v302 = vmul.f32 %v281, %v295
    %v303 = vmul.f32 %v282, %v299
    %v304 = vmul.f32 %v283, %v295
    %v305 = vmul.f32 %v284, %v299
    %v306 = vmul.f32 %v285, %v295
    %v307 = vmul.f32 %v286, %v299
    %v308 = vmul.f32 %v287, %v295
    %v309 = vmul.f32 %v288, %v299
    %v310 = vadd.f32 %v232, %v302
    %v311 = vadd.f32 %v233, %v303
    %v312 = vadd.f32 %v234, %v304
    %v313 = vadd.f32 %v235, %v305
    %v314 = vadd.f32 %v236, %v306
    %v315 = vadd.f32 %v237, %v307
    %v316 = vadd.f32 %v238, %v308
    %v317 = vadd.f32 %v239, %v309
    %318 = vrot.lane.b32.xlu0 %v43, 1
    %v319 = vpop.permute.xlu0 %318
    %320 = vrot.lane.b32.xlu0 %v45, 1
    %v321 = vpop.permute.xlu0 %320
    %322 = vrot.lane.b32.xlu0 %v47, 1
    %v323 = vpop.permute.xlu0 %322
    %324 = vrot.lane.b32.xlu0 %v49, 1
    %v325 = vpop.permute.xlu0 %324
    %326 = vrot.lane.b32.xlu0 %v44, 1
    %v327 = vpop.permute.xlu0 %326
    %328 = vrot.lane.b32.xlu0 %v46, 1
    %v329 = vpop.permute.xlu0 %328
    %330 = vrot.lane.b32.xlu0 %v48, 1
    %v331 = vpop.permute.xlu0 %330
    %332 = vrot.lane.b32.xlu0 %v50, 1
    %v333 = vpop.permute.xlu0 %332
    %vm334 = vcmp.lt.s32.totalorder %v100, 1
    %v335 = vsel %vm334, %v319, %v327
    %v336 = vsel %vm334, %v321, %v329
    %v337 = vsel %vm334, %v323, %v331
    %v338 = vsel %vm334, %v325, %v333
    %v339 = vsel %vm334, %v327, %v319
    %v340 = vsel %vm334, %v329, %v321
    %v341 = vsel %vm334, %v331, %v323
    %v342 = vsel %vm334, %v333, %v325
    %343 = vset.pattern.permute.xlu0 3
    %344 = vperm.xlu0 %343, %v51
    %v345 = vpop.permute.xlu0 %344
    %347 = vset.pattern.permute.xlu0 3
    %348 = vperm.xlu0 %347, %v52
    %v349 = vpop.permute.xlu0 %348
    %351 = vset.pattern.permute.xlu0 3
    %352 = vperm.xlu0 %351, %v53
    %v353 = vpop.permute.xlu0 %352
    %355 = vset.pattern.permute.xlu0 3
    %356 = vperm.xlu0 %355, %v54
    %v357 = vpop.permute.xlu0 %356
    %v359 = vmul.f32 %v339, %v345
    %v360 = vmul.f32 %v335, %v345
    %v361 = vmul.f32 %v340, %v349
    %v362 = vmul.f32 %v336, %v349
    %v363 = vmul.f32 %v341, %v353
    %v364 = vmul.f32 %v337, %v353
    %v365 = vmul.f32 %v342, %v357
    %v366 = vmul.f32 %v338, %v357
    %s367 = scalar_lea.vmem %s2, 3
    %v368 = vld [vmem:[%s367] ss:$8 sm:$0x3]
    %v370 = vlaneseq
    %v371 = vshrl.u32 %v370, 7
    %v372 = vsub.s32 0, %v371
    %v373 = vrot.slane %v368, %v372
    %v374 = vlaneseq
    %v375 = vshrl.u32 %v374, 7
    %v376 = vsub.s32 1, %v375
    %v377 = vrot.slane %v368, %v376
    %v380 = vmul.f32 %v359, %v373
    %v381 = vmul.f32 %v360, %v377
    %v382 = vmul.f32 %v361, %v373
    %v383 = vmul.f32 %v362, %v377
    %v384 = vmul.f32 %v363, %v373
    %v385 = vmul.f32 %v364, %v377
    %v386 = vmul.f32 %v365, %v373
    %v387 = vmul.f32 %v366, %v377
    %v388 = vadd.f32 %v310, %v380
    %v389 = vadd.f32 %v311, %v381
    %v390 = vadd.f32 %v312, %v382
    %v391 = vadd.f32 %v313, %v383
    %v392 = vadd.f32 %v314, %v384
    %v393 = vadd.f32 %v315, %v385
    %v394 = vadd.f32 %v316, %v386
    %v395 = vadd.f32 %v317, %v387
    %396 = vrot.lane.b32.xlu0 %v43, 127
    %v397 = vpop.permute.xlu0 %396
    %398 = vrot.lane.b32.xlu0 %v45, 127
    %v399 = vpop.permute.xlu0 %398
    %400 = vrot.lane.b32.xlu0 %v47, 127
    %v401 = vpop.permute.xlu0 %400
    %402 = vrot.lane.b32.xlu0 %v49, 127
    %v403 = vpop.permute.xlu0 %402
    %404 = vrot.lane.b32.xlu0 %v44, 127
    %v405 = vpop.permute.xlu0 %404
    %406 = vrot.lane.b32.xlu0 %v46, 127
    %v407 = vpop.permute.xlu0 %406
    %408 = vrot.lane.b32.xlu0 %v48, 127
    %v409 = vpop.permute.xlu0 %408
    %410 = vrot.lane.b32.xlu0 %v50, 127
    %v411 = vpop.permute.xlu0 %410
    %vm412 = vcmp.lt.s32.totalorder %v100, 127
    %v413 = vsel %vm412, %v397, %v405
    %v414 = vsel %vm412, %v399, %v407
    %v415 = vsel %vm412, %v401, %v409
    %v416 = vsel %vm412, %v403, %v411
    %v417 = vsel %vm412, %v405, %v397
    %v418 = vsel %vm412, %v407, %v399
    %v419 = vsel %vm412, %v409, %v401
    %v420 = vsel %vm412, %v411, %v403
    %421 = vset.pattern.permute.xlu0 5
    %422 = vperm.xlu0 %421, %v51
    %v423 = vpop.permute.xlu0 %422
    %425 = vset.pattern.permute.xlu0 5
    %426 = vperm.xlu0 %425, %v52
    %v427 = vpop.permute.xlu0 %426
    %429 = vset.pattern.permute.xlu0 5
    %430 = vperm.xlu0 %429, %v53
    %v431 = vpop.permute.xlu0 %430
    %433 = vset.pattern.permute.xlu0 5
    %434 = vperm.xlu0 %433, %v54
    %v435 = vpop.permute.xlu0 %434
    %v437 = vmul.f32 %v413, %v423
    %v438 = vmul.f32 %v417, %v423
    %v439 = vmul.f32 %v414, %v427
    %v440 = vmul.f32 %v418, %v427
    %v441 = vmul.f32 %v415, %v431
    %v442 = vmul.f32 %v419, %v431
    %v443 = vmul.f32 %v416, %v435
    %v444 = vmul.f32 %v420, %v435
    %s445 = scalar_lea.vmem %s2, 5
    %v446 = vld [vmem:[%s445] ss:$8 sm:$0x3]
    %v448 = vlaneseq
    %v449 = vshrl.u32 %v448, 7
    %v450 = vsub.s32 0, %v449
    %v451 = vrot.slane %v446, %v450
    %v452 = vlaneseq
    %v453 = vshrl.u32 %v452, 7
    %v454 = vsub.s32 1, %v453
    %v455 = vrot.slane %v446, %v454
    %v458 = vmul.f32 %v437, %v451
    %v459 = vmul.f32 %v438, %v455
    %v460 = vmul.f32 %v439, %v451
    %v461 = vmul.f32 %v440, %v455
    %v462 = vmul.f32 %v441, %v451
    %v463 = vmul.f32 %v442, %v455
    %v464 = vmul.f32 %v443, %v451
    %v465 = vmul.f32 %v444, %v455
    %v466 = vadd.f32 %v388, %v458
    %v467 = vadd.f32 %v389, %v459
    %v468 = vadd.f32 %v390, %v460
    %v469 = vadd.f32 %v391, %v461
    %v470 = vadd.f32 %v392, %v462
    %v471 = vadd.f32 %v393, %v463
    %v472 = vadd.f32 %v394, %v464
    %v473 = vadd.f32 %v395, %v465
    %474 = vrot.lane.b32.xlu0 %v43, 113
    %v475 = vpop.permute.xlu0 %474
    %476 = vrot.lane.b32.xlu0 %v45, 113
    %v477 = vpop.permute.xlu0 %476
    %478 = vrot.lane.b32.xlu0 %v47, 113
    %v479 = vpop.permute.xlu0 %478
    %480 = vrot.lane.b32.xlu0 %v49, 113
    %v481 = vpop.permute.xlu0 %480
    %482 = vrot.lane.b32.xlu0 %v44, 113
    %v483 = vpop.permute.xlu0 %482
    %484 = vrot.lane.b32.xlu0 %v46, 113
    %v485 = vpop.permute.xlu0 %484
    %486 = vrot.lane.b32.xlu0 %v48, 113
    %v487 = vpop.permute.xlu0 %486
    %488 = vrot.lane.b32.xlu0 %v50, 113
    %v489 = vpop.permute.xlu0 %488
    %vm490 = vcmp.lt.s32.totalorder %v100, 113
    %v491 = vsel %vm490, %v475, %v483
    %v492 = vsel %vm490, %v477, %v485
    %v493 = vsel %vm490, %v479, %v487
    %v494 = vsel %vm490, %v481, %v489
    %v495 = vsel %vm490, %v483, %v475
    %v496 = vsel %vm490, %v485, %v477
    %v497 = vsel %vm490, %v487, %v479
    %v498 = vsel %vm490, %v489, %v481
    %499 = vset.pattern.permute.xlu0 6
    %500 = vperm.xlu0 %499, %v51
    %v501 = vpop.permute.xlu0 %500
    %503 = vset.pattern.permute.xlu0 6
    %504 = vperm.xlu0 %503, %v52
    %v505 = vpop.permute.xlu0 %504
    %507 = vset.pattern.permute.xlu0 6
    %508 = vperm.xlu0 %507, %v53
    %v509 = vpop.permute.xlu0 %508
    %511 = vset.pattern.permute.xlu0 6
    %512 = vperm.xlu0 %511, %v54
    %v513 = vpop.permute.xlu0 %512
    %v515 = vmul.f32 %v491, %v501
    %v516 = vmul.f32 %v495, %v501
    %v517 = vmul.f32 %v492, %v505
    %v518 = vmul.f32 %v496, %v505
    %v519 = vmul.f32 %v493, %v509
    %v520 = vmul.f32 %v497, %v509
    %v521 = vmul.f32 %v494, %v513
    %v522 = vmul.f32 %v498, %v513
    %s523 = scalar_lea.vmem %s2, 6
    %v524 = vld [vmem:[%s523] ss:$8 sm:$0x3]
    %v526 = vlaneseq
    %v527 = vshrl.u32 %v526, 7
    %v528 = vsub.s32 0, %v527
    %v529 = vrot.slane %v524, %v528
    %v530 = vlaneseq
    %v531 = vshrl.u32 %v530, 7
    %v532 = vsub.s32 1, %v531
    %v533 = vrot.slane %v524, %v532
    %v536 = vmul.f32 %v515, %v529
    %v537 = vmul.f32 %v516, %v533
    %v538 = vmul.f32 %v517, %v529
    %v539 = vmul.f32 %v518, %v533
    %v540 = vmul.f32 %v519, %v529
    %v541 = vmul.f32 %v520, %v533
    %v542 = vmul.f32 %v521, %v529
    %v543 = vmul.f32 %v522, %v533
    %v544 = vadd.f32 %v466, %v536
    %v545 = vadd.f32 %v467, %v537
    %v546 = vadd.f32 %v468, %v538
    %v547 = vadd.f32 %v469, %v539
    %v548 = vadd.f32 %v470, %v540
    %v549 = vadd.f32 %v471, %v541
    %v550 = vadd.f32 %v472, %v542
    %v551 = vadd.f32 %v473, %v543
    %552 = vrot.lane.b32.xlu0 %v43, 112
    %v553 = vpop.permute.xlu0 %552
    %554 = vrot.lane.b32.xlu0 %v45, 112
    %v555 = vpop.permute.xlu0 %554
    %556 = vrot.lane.b32.xlu0 %v47, 112
    %v557 = vpop.permute.xlu0 %556
    %558 = vrot.lane.b32.xlu0 %v49, 112
    %v559 = vpop.permute.xlu0 %558
    %560 = vrot.lane.b32.xlu0 %v44, 112
    %v561 = vpop.permute.xlu0 %560
    %562 = vrot.lane.b32.xlu0 %v46, 112
    %v563 = vpop.permute.xlu0 %562
    %564 = vrot.lane.b32.xlu0 %v48, 112
    %v565 = vpop.permute.xlu0 %564
    %566 = vrot.lane.b32.xlu0 %v50, 112
    %v567 = vpop.permute.xlu0 %566
    %vm568 = vcmp.lt.s32.totalorder %v100, 112
    %v569 = vsel %vm568, %v553, %v561
    %v570 = vsel %vm568, %v555, %v563
    %v571 = vsel %vm568, %v557, %v565
    %v572 = vsel %vm568, %v559, %v567
    %v573 = vsel %vm568, %v561, %v553
    %v574 = vsel %vm568, %v563, %v555
    %v575 = vsel %vm568, %v565, %v557
    %v576 = vsel %vm568, %v567, %v559
    %577 = vset.pattern.permute.xlu0 7
    %578 = vperm.xlu0 %577, %v51
    %v579 = vpop.permute.xlu0 %578
    %581 = vset.pattern.permute.xlu0 7
    %582 = vperm.xlu0 %581, %v52
    %v583 = vpop.permute.xlu0 %582
    %585 = vset.pattern.permute.xlu0 7
    %586 = vperm.xlu0 %585, %v53
    %v587 = vpop.permute.xlu0 %586
    %589 = vset.pattern.permute.xlu0 7
    %590 = vperm.xlu0 %589, %v54
    %v591 = vpop.permute.xlu0 %590
    %v593 = vmul.f32 %v569, %v579
    %v594 = vmul.f32 %v573, %v579
    %v595 = vmul.f32 %v570, %v583
    %v596 = vmul.f32 %v574, %v583
    %v597 = vmul.f32 %v571, %v587
    %v598 = vmul.f32 %v575, %v587
    %v599 = vmul.f32 %v572, %v591
    %v600 = vmul.f32 %v576, %v591
    %s601 = scalar_lea.vmem %s2, 7
    %v602 = vld [vmem:[%s601] ss:$8 sm:$0x3]
    %v604 = vlaneseq
    %v605 = vshrl.u32 %v604, 7
    %v606 = vsub.s32 0, %v605
    %v607 = vrot.slane %v602, %v606
    %v608 = vlaneseq
    %v609 = vshrl.u32 %v608, 7
    %v610 = vsub.s32 1, %v609
    %v611 = vrot.slane %v602, %v610
    %v614 = vmul.f32 %v593, %v607
    %v615 = vmul.f32 %v594, %v611
    %v616 = vmul.f32 %v595, %v607
    %v617 = vmul.f32 %v596, %v611
    %v618 = vmul.f32 %v597, %v607
    %v619 = vmul.f32 %v598, %v611
    %v620 = vmul.f32 %v599, %v607
    %v621 = vmul.f32 %v600, %v611
    %v622 = vadd.f32 %v544, %v614
    %v623 = vadd.f32 %v545, %v615
    %v624 = vadd.f32 %v546, %v616
    %v625 = vadd.f32 %v547, %v617
    %v626 = vadd.f32 %v548, %v618
    %v627 = vadd.f32 %v549, %v619
    %v628 = vadd.f32 %v550, %v620
    %v629 = vadd.f32 %v551, %v621
    %630 = vrot.lane.b32.xlu0 %v43, 111
    %v631 = vpop.permute.xlu0 %630
    %632 = vrot.lane.b32.xlu0 %v45, 111
    %v633 = vpop.permute.xlu0 %632
    %634 = vrot.lane.b32.xlu0 %v47, 111
    %v635 = vpop.permute.xlu0 %634
    %636 = vrot.lane.b32.xlu0 %v49, 111
    %v637 = vpop.permute.xlu0 %636
    %638 = vrot.lane.b32.xlu0 %v44, 111
    %v639 = vpop.permute.xlu0 %638
    %640 = vrot.lane.b32.xlu0 %v46, 111
    %v641 = vpop.permute.xlu0 %640
    %642 = vrot.lane.b32.xlu0 %v48, 111
    %v643 = vpop.permute.xlu0 %642
    %644 = vrot.lane.b32.xlu0 %v50, 111
    %v645 = vpop.permute.xlu0 %644
    %vm646 = vcmp.lt.s32.totalorder %v100, 111
    %v647 = vsel %vm646, %v631, %v639
    %v648 = vsel %vm646, %v633, %v641
    %v649 = vsel %vm646, %v635, %v643
    %v650 = vsel %vm646, %v637, %v645
    %v651 = vsel %vm646, %v639, %v631
    %v652 = vsel %vm646, %v641, %v633
    %v653 = vsel %vm646, %v643, %v635
    %v654 = vsel %vm646, %v645, %v637
    %655 = vset.pattern.permute.xlu0 8
    %656 = vperm.xlu0 %655, %v51
    %v657 = vpop.permute.xlu0 %656
    %659 = vset.pattern.permute.xlu0 8
    %660 = vperm.xlu0 %659, %v52
    %v661 = vpop.permute.xlu0 %660
    %663 = vset.pattern.permute.xlu0 8
    %664 = vperm.xlu0 %663, %v53
    %v665 = vpop.permute.xlu0 %664
    %667 = vset.pattern.permute.xlu0 8
    %668 = vperm.xlu0 %667, %v54
    %v669 = vpop.permute.xlu0 %668
    %v671 = vmul.f32 %v647, %v657
    %v672 = vmul.f32 %v651, %v657
    %v673 = vmul.f32 %v648, %v661
    %v674 = vmul.f32 %v652, %v661
    %v675 = vmul.f32 %v649, %v665
    %v676 = vmul.f32 %v653, %v665
    %v677 = vmul.f32 %v650, %v669
    %v678 = vmul.f32 %v654, %v669
    %s679 = scalar_lea.vmem %s2, 16
    %v680 = vld [vmem:[%s679] ss:$8 sm:$0x3]
    %v682 = vlaneseq
    %v683 = vshrl.u32 %v682, 7
    %v684 = vsub.s32 0, %v683
    %v685 = vrot.slane %v680, %v684
    %v686 = vlaneseq
    %v687 = vshrl.u32 %v686, 7
    %v688 = vsub.s32 1, %v687
    %v689 = vrot.slane %v680, %v688
    %v692 = vmul.f32 %v671, %v685
    %v693 = vmul.f32 %v672, %v689
    %v694 = vmul.f32 %v673, %v685
    %v695 = vmul.f32 %v674, %v689
    %v696 = vmul.f32 %v675, %v685
    %v697 = vmul.f32 %v676, %v689
    %v698 = vmul.f32 %v677, %v685
    %v699 = vmul.f32 %v678, %v689
    %v700 = vadd.f32 %v622, %v692
    %v701 = vadd.f32 %v623, %v693
    %v702 = vadd.f32 %v624, %v694
    %v703 = vadd.f32 %v625, %v695
    %v704 = vadd.f32 %v626, %v696
    %v705 = vadd.f32 %v627, %v697
    %v706 = vadd.f32 %v628, %v698
    %v707 = vadd.f32 %v629, %v699
    %709 = vset.pattern.permute.xlu0 0
    %710 = vperm.xlu0 %709, %v35
    %v711 = vpop.permute.xlu0 %710
    %714 = vset.pattern.permute.xlu0 0
    %715 = vperm.xlu0 %714, %v36
    %v716 = vpop.permute.xlu0 %715
    %719 = vset.pattern.permute.xlu0 0
    %720 = vperm.xlu0 %719, %v37
    %v721 = vpop.permute.xlu0 %720
    %724 = vset.pattern.permute.xlu0 0
    %725 = vperm.xlu0 %724, %v38
    %v726 = vpop.permute.xlu0 %725
    %v728 = vadd.f32 %v700, %v711
    %v729 = vadd.f32 %v701, %v711
    %v730 = vadd.f32 %v702, %v716
    %v731 = vadd.f32 %v703, %v716
    %v732 = vadd.f32 %v704, %v721
    %v733 = vadd.f32 %v705, %v721
    %v734 = vadd.f32 %v706, %v726
    %v735 = vadd.f32 %v707, %v726
    %vm736 = vcmp.ge.f32.partialorder %v728, 0.0
    %vm737 = vcmp.ge.f32.partialorder %v729, 0.0
    %vm738 = vcmp.ge.f32.partialorder %v730, 0.0
    %vm739 = vcmp.ge.f32.partialorder %v731, 0.0
    %vm740 = vcmp.ge.f32.partialorder %v732, 0.0
    %vm741 = vcmp.ge.f32.partialorder %v733, 0.0
    %vm742 = vcmp.ge.f32.partialorder %v734, 0.0
    %vm743 = vcmp.ge.f32.partialorder %v735, 0.0
    %v744 = vmul.f32 %v728, 0.1
    %v745 = vmul.f32 %v729, 0.1
    %v746 = vmul.f32 %v730, 0.1
    %v747 = vmul.f32 %v731, 0.1
    %v748 = vmul.f32 %v732, 0.1
    %v749 = vmul.f32 %v733, 0.1
    %v750 = vmul.f32 %v734, 0.1
    %v751 = vmul.f32 %v735, 0.1
    %v752 = vsel %vm736, %v728, %v744
    %v753 = vsel %vm737, %v729, %v745
    %v754 = vsel %vm738, %v730, %v746
    %v755 = vsel %vm739, %v731, %v747
    %v756 = vsel %vm740, %v732, %v748
    %v757 = vsel %vm741, %v733, %v749
    %v758 = vsel %vm742, %v734, %v750
    %v759 = vsel %vm743, %v735, %v751
    %760 = vset.pattern.permute.xlu0 1
    %761 = vperm.xlu0 %760, %v35
    %v762 = vpop.permute.xlu0 %761
    %764 = vset.pattern.permute.xlu0 1
    %765 = vperm.xlu0 %764, %v36
    %v766 = vpop.permute.xlu0 %765
    %768 = vset.pattern.permute.xlu0 1
    %769 = vperm.xlu0 %768, %v37
    %v770 = vpop.permute.xlu0 %769
    %772 = vset.pattern.permute.xlu0 1
    %773 = vperm.xlu0 %772, %v38
    %v774 = vpop.permute.xlu0 %773
    %vm776 = vcmask 261120
    %v778 = vsel %vm776, %v39, 0
    %v781 = vsel %vm776, %v40, 0
    %v784 = vsel %vm776, %v41, 0
    %v787 = vsel %vm776, %v42, 0
    %789 = vmatprep.subr.mxu0 0.0
    %790 = vmatpush1.msra.mxu0 0.0
    %791 = vmatprep.subr.mxu0 0.0
    %792 = vmatpush1.msra.mxu0 0.0
    %793 = vmatprep.subr.mxu0 0.0
    %794 = vmatpush1.msra.mxu0 0.0
    %795 = vmatprep.subr.mxu0 0.0
    %796 = vmatpush1.msra.mxu0 0.0
    %797 = vmatprep.subr.mxu0 0.0
    %798 = vmatpush1.msra.mxu0 0.0
    %799 = vmatprep.subr.mxu0 0.0
    %800 = vmatpush1.msra.mxu0 0.0
    %801 = vmatprep.subr.mxu0 0.0
    %802 = vmatpush1.msra.mxu0 0.0
    %803 = vmatprep.subr.mxu0 0.0
    %804 = vmatpush1.msra.mxu0 0.0
    %805 = vmatprep.subr.mxu0 0.0
    %806 = vmatpush1.msra.mxu0 0.0
    %807 = vmatprep.subr.mxu0 0.0
    %808 = vmatpush1.msra.mxu0 0.0
    %809 = vmatprep.subr.mxu0 0.0
    %810 = vmatpush1.msra.mxu0 0.0
    %811 = vmatprep.subr.mxu0 0.0
    %812 = vmatpush1.msra.mxu0 0.0
    %813 = vmatprep.subr.mxu0 %v759
    %814 = vmatpush1.msra.mxu0 %v758
    %815 = vmatprep.subr.mxu0 %v757
    %816 = vmatpush1.msra.mxu0 %v756
    %817 = vmatprep.subr.mxu0 %v755
    %818 = vmatpush1.msra.mxu0 %v754
    %819 = vmatprep.subr.mxu0 %v753
    %820 = vmatpush1.msra.mxu0 %v752
    %821 = vmatprep.subr.mxu0 0.0
    %822 = vmatpush2.msra.mxu0 0.0
    %823 = vmatprep.subr.mxu0 0.0
    %824 = vmatpush2.msra.mxu0 0.0
    %825 = vmatprep.subr.mxu0 0.0
    %826 = vmatpush2.msra.mxu0 0.0
    %827 = vmatprep.subr.mxu0 0.0
    %828 = vmatpush2.msra.mxu0 0.0
    %829 = vmatprep.subr.mxu0 0.0
    %830 = vmatpush2.msra.mxu0 0.0
    %831 = vmatprep.subr.mxu0 0.0
    %832 = vmatpush2.msra.mxu0 0.0
    %833 = vmatprep.subr.mxu0 0.0
    %834 = vmatpush2.msra.mxu0 0.0
    %835 = vmatprep.subr.mxu0 0.0
    %836 = vmatpush2.msra.mxu0 0.0
    %837 = vmatprep.subr.mxu0 0.0
    %838 = vmatpush2.msra.mxu0 0.0
    %839 = vmatprep.subr.mxu0 0.0
    %840 = vmatpush2.msra.mxu0 0.0
    %841 = vmatprep.subr.mxu0 0.0
    %842 = vmatpush2.msra.mxu0 0.0
    %843 = vmatprep.subr.mxu0 0.0
    %844 = vmatpush2.msra.mxu0 0.0
    %845 = vmatprep.subr.mxu0 0.0
    %846 = vmatpush2.msra.mxu0 0.0
    %847 = vmatprep.subr.mxu0 0.0
    %848 = vmatpush2.msra.mxu0 0.0
    %849 = vmatprep.subr.mxu0 0.0
    %850 = vmatpush2.msra.mxu0 0.0
    %851 = vmatprep.subr.mxu0 0.0
    %852 = vmatpush2.msra.mxu0 0.0
    %853 = vmatprep.mubr.f32.mxu0 0.0
    %854 = vmatmul.mubr.f32.gmra.mxu0 %v778
    %v855 = vpop.f32.mrf.mxu0
    %v856 = vadd.f32 %v762, %v855
    %v857 = vpop.f32.mrf.mxu0
    %v858 = vadd.f32 %v762, %v857
    %859 = vmatprep.mubr.f32.mxu0 0.0
    %860 = vmatmul.mubr.f32.gmra.mxu0 %v781
    %v861 = vpop.f32.mrf.mxu0
    %v862 = vadd.f32 %v766, %v861
    %v863 = vpop.f32.mrf.mxu0
    %v864 = vadd.f32 %v766, %v863
    %865 = vmatprep.mubr.f32.mxu0 0.0
    %866 = vmatmul.mubr.f32.gmra.mxu0 %v784
    %v867 = vpop.f32.mrf.mxu0
    %v868 = vadd.f32 %v770, %v867
    %v869 = vpop.f32.mrf.mxu0
    %v870 = vadd.f32 %v770, %v869
    %871 = vmatprep.mubr.f32.mxu0 0.0
    %872 = vmatmul.mubr.f32.gmra.mxu0 %v787
    %v873 = vpop.f32.mrf.mxu0
    %v874 = vadd.f32 %v774, %v873
    %v875 = vpop.f32.mrf.mxu0
    %v876 = vadd.f32 %v774, %v875
    %877 = vdwg.mxu0
    %vm878 = vcmp.ge.f32.partialorder %v856, 0.0
    %vm879 = vcmp.ge.f32.partialorder %v858, 0.0
    %vm880 = vcmp.ge.f32.partialorder %v862, 0.0
    %vm881 = vcmp.ge.f32.partialorder %v864, 0.0
    %vm882 = vcmp.ge.f32.partialorder %v868, 0.0
    %vm883 = vcmp.ge.f32.partialorder %v870, 0.0
    %vm884 = vcmp.ge.f32.partialorder %v874, 0.0
    %vm885 = vcmp.ge.f32.partialorder %v876, 0.0
    %v886 = vmul.f32 %v856, 0.1
    %v887 = vmul.f32 %v858, 0.1
    %v888 = vmul.f32 %v862, 0.1
    %v889 = vmul.f32 %v864, 0.1
    %v890 = vmul.f32 %v868, 0.1
    %v891 = vmul.f32 %v870, 0.1
    %v892 = vmul.f32 %v874, 0.1
    %v893 = vmul.f32 %v876, 0.1
    %v894 = vsel %vm878, %v856, %v886
    %v895 = vsel %vm879, %v858, %v887
    %v896 = vsel %vm880, %v862, %v888
    %v897 = vsel %vm881, %v864, %v889
    %v898 = vsel %vm882, %v868, %v890
    %v899 = vsel %vm883, %v870, %v891
    %v900 = vsel %vm884, %v874, %v892
    %v901 = vsel %vm885, %v876, %v893
    %v902 = vadd.f32 %v894, %v43
    %v903 = vadd.f32 %v895, %v44
    %v904 = vadd.f32 %v896, %v45
    %v905 = vadd.f32 %v897, %v46
    %v906 = vadd.f32 %v898, %v47
    %v907 = vadd.f32 %v899, %v48
    %v908 = vadd.f32 %v900, %v49
    %v909 = vadd.f32 %v901, %v50
    %910 = vst [vmem:[#allocation5] sm:$0xff] %v902
    %911 = vst [vmem:[#allocation5 + $0x8] sm:$0xff] %v903
    %912 = vst [vmem:[#allocation5 + $0x10] sm:$0xff] %v904
    %913 = vst [vmem:[#allocation5 + $0x18] sm:$0xff] %v905
    %914 = vst [vmem:[#allocation5 + $0x20] sm:$0xff] %v906
    %915 = vst [vmem:[#allocation5 + $0x28] sm:$0xff] %v907
    %916 = vst [vmem:[#allocation5 + $0x30] sm:$0xff] %v908
    %917 = vst [vmem:[#allocation5 + $0x38] sm:$0xff] %v909
    %s918 = scalar_lea.vmem [#allocation2], 64
    %v919 = vld [vmem:[%s918] sm:$0xff]
    %v920 = vld [vmem:[%s918 + $0x8] sm:$0xff]
    %v921 = vld [vmem:[%s918 + $0x10] sm:$0xff]
    %v922 = vld [vmem:[%s918 + $0x18] sm:$0xff]
    %v923 = vld [vmem:[%s918 + $0x20] sm:$0xff]
    %v924 = vld [vmem:[%s918 + $0x28] sm:$0xff]
    %v925 = vld [vmem:[%s918 + $0x30] sm:$0xff]
    %v926 = vld [vmem:[%s918 + $0x38] sm:$0xff]
    %v927 = vld [vmem:[%s1] sm:$0xff]
    %v928 = vld [vmem:[%s1 + $0x8] sm:$0xff]
    %v929 = vld [vmem:[%s1 + $0x10] sm:$0xff]
    %v930 = vld [vmem:[%s1 + $0x18] sm:$0xff]
    %932 = vset.pattern.permute.xlu0 4
    %933 = vperm.xlu0 %932, %v927
    %v934 = vpop.permute.xlu0 %933
    %937 = vset.pattern.permute.xlu0 4
    %938 = vperm.xlu0 %937, %v928
    %v939 = vpop.permute.xlu0 %938
    %942 = vset.pattern.permute.xlu0 4
    %943 = vperm.xlu0 %942, %v929
    %v944 = vpop.permute.xlu0 %943
    %947 = vset.pattern.permute.xlu0 4
    %948 = vperm.xlu0 %947, %v930
    %v949 = vpop.permute.xlu0 %948
    %v951 = vmul.f32 %v919, %v934
    %v952 = vmul.f32 %v920, %v934
    %v953 = vmul.f32 %v921, %v939
    %v954 = vmul.f32 %v922, %v939
    %v955 = vmul.f32 %v923, %v944
    %v956 = vmul.f32 %v924, %v944
    %v957 = vmul.f32 %v925, %v949
    %v958 = vmul.f32 %v926, %v949
    %959 = vrot.lane.b32.xlu0 %v919, 17
    %v960 = vpop.permute.xlu0 %959
    %961 = vrot.lane.b32.xlu0 %v921, 17
    %v962 = vpop.permute.xlu0 %961
    %963 = vrot.lane.b32.xlu0 %v923, 17
    %v964 = vpop.permute.xlu0 %963
    %965 = vrot.lane.b32.xlu0 %v925, 17
    %v966 = vpop.permute.xlu0 %965
    %967 = vrot.lane.b32.xlu0 %v920, 17
    %v968 = vpop.permute.xlu0 %967
    %969 = vrot.lane.b32.xlu0 %v922, 17
    %v970 = vpop.permute.xlu0 %969
    %971 = vrot.lane.b32.xlu0 %v924, 17
    %v972 = vpop.permute.xlu0 %971
    %973 = vrot.lane.b32.xlu0 %v926, 17
    %v974 = vpop.permute.xlu0 %973
    %v975 = vsel %vm101, %v960, %v968
    %v976 = vsel %vm101, %v962, %v970
    %v977 = vsel %vm101, %v964, %v972
    %v978 = vsel %vm101, %v966, %v974
    %v979 = vsel %vm101, %v968, %v960
    %v980 = vsel %vm101, %v970, %v962
    %v981 = vsel %vm101, %v972, %v964
    %v982 = vsel %vm101, %v974, %v966
    %983 = vset.pattern.permute.xlu0 0
    %984 = vperm.xlu0 %983, %v927
    %v985 = vpop.permute.xlu0 %984
    %987 = vset.pattern.permute.xlu0 0
    %988 = vperm.xlu0 %987, %v928
    %v989 = vpop.permute.xlu0 %988
    %991 = vset.pattern.permute.xlu0 0
    %992 = vperm.xlu0 %991, %v929
    %v993 = vpop.permute.xlu0 %992
    %995 = vset.pattern.permute.xlu0 0
    %996 = vperm.xlu0 %995, %v930
    %v997 = vpop.permute.xlu0 %996
    %v999 = vmul.f32 %v979, %v985
    %v1000 = vmul.f32 %v975, %v985
    %v1001 = vmul.f32 %v980, %v989
    %v1002 = vmul.f32 %v976, %v989
    %v1003 = vmul.f32 %v981, %v993
    %v1004 = vmul.f32 %v977, %v993
    %v1005 = vmul.f32 %v982, %v997
    %v1006 = vmul.f32 %v978, %v997
    %v1007 = vld [vmem:[%s2] ss:$8 sm:$0x3]
    %v1009 = vlaneseq
    %v1010 = vshrl.u32 %v1009, 7
    %v1011 = vsub.s32 0, %v1010
    %v1012 = vrot.slane %v1007, %v1011
    %v1013 = vlaneseq
    %v1014 = vshrl.u32 %v1013, 7
    %v1015 = vsub.s32 1, %v1014
    %v1016 = vrot.slane %v1007, %v1015
    %v1019 = vmul.f32 %v999, %v1012
    %v1020 = vmul.f32 %v1000, %v1016
    %v1021 = vmul.f32 %v1001, %v1012
    %v1022 = vmul.f32 %v1002, %v1016
    %v1023 = vmul.f32 %v1003, %v1012
    %v1024 = vmul.f32 %v1004, %v1016
    %v1025 = vmul.f32 %v1005, %v1012
    %v1026 = vmul.f32 %v1006, %v1016
    %v1027 = vadd.f32 %v951, %v1019
    %v1028 = vadd.f32 %v952, %v1020
    %v1029 = vadd.f32 %v953, %v1021
    %v1030 = vadd.f32 %v954, %v1022
    %v1031 = vadd.f32 %v955, %v1023
    %v1032 = vadd.f32 %v956, %v1024
    %v1033 = vadd.f32 %v957, %v1025
    %v1034 = vadd.f32 %v958, %v1026
    %1035 = vrot.lane.b32.xlu0 %v919, 16
    %v1036 = vpop.permute.xlu0 %1035
    %1037 = vrot.lane.b32.xlu0 %v921, 16
    %v1038 = vpop.permute.xlu0 %1037
    %1039 = vrot.lane.b32.xlu0 %v923, 16
    %v1040 = vpop.permute.xlu0 %1039
    %1041 = vrot.lane.b32.xlu0 %v925, 16
    %v1042 = vpop.permute.xlu0 %1041
    %1043 = vrot.lane.b32.xlu0 %v920, 16
    %v1044 = vpop.permute.xlu0 %1043
    %1045 = vrot.lane.b32.xlu0 %v922, 16
    %v1046 = vpop.permute.xlu0 %1045
    %1047 = vrot.lane.b32.xlu0 %v924, 16
    %v1048 = vpop.permute.xlu0 %1047
    %1049 = vrot.lane.b32.xlu0 %v926, 16
    %v1050 = vpop.permute.xlu0 %1049
    %v1051 = vsel %vm178, %v1036, %v1044
    %v1052 = vsel %vm178, %v1038, %v1046
    %v1053 = vsel %vm178, %v1040, %v1048
    %v1054 = vsel %vm178, %v1042, %v1050
    %v1055 = vsel %vm178, %v1044, %v1036
    %v1056 = vsel %vm178, %v1046, %v1038
    %v1057 = vsel %vm178, %v1048, %v1040
    %v1058 = vsel %vm178, %v1050, %v1042
    %1059 = vset.pattern.permute.xlu0 1
    %1060 = vperm.xlu0 %1059, %v927
    %v1061 = vpop.permute.xlu0 %1060
    %1063 = vset.pattern.permute.xlu0 1
    %1064 = vperm.xlu0 %1063, %v928
    %v1065 = vpop.permute.xlu0 %1064
    %1067 = vset.pattern.permute.xlu0 1
    %1068 = vperm.xlu0 %1067, %v929
    %v1069 = vpop.permute.xlu0 %1068
    %1071 = vset.pattern.permute.xlu0 1
    %1072 = vperm.xlu0 %1071, %v930
    %v1073 = vpop.permute.xlu0 %1072
    %v1075 = vmul.f32 %v1055, %v1061
    %v1076 = vmul.f32 %v1051, %v1061
    %v1077 = vmul.f32 %v1056, %v1065
    %v1078 = vmul.f32 %v1052, %v1065
    %v1079 = vmul.f32 %v1057, %v1069
    %v1080 = vmul.f32 %v1053, %v1069
    %v1081 = vmul.f32 %v1058, %v1073
    %v1082 = vmul.f32 %v1054, %v1073
    %v1083 = vld [vmem:[%s211] ss:$8 sm:$0x3]
    %v1085 = vlaneseq
    %v1086 = vshrl.u32 %v1085, 7
    %v1087 = vsub.s32 0, %v1086
    %v1088 = vrot.slane %v1083, %v1087
    %v1089 = vlaneseq
    %v1090 = vshrl.u32 %v1089, 7
    %v1091 = vsub.s32 1, %v1090
    %v1092 = vrot.slane %v1083, %v1091
    %v1095 = vmul.f32 %v1075, %v1088
    %v1096 = vmul.f32 %v1076, %v1092
    %v1097 = vmul.f32 %v1077, %v1088
    %v1098 = vmul.f32 %v1078, %v1092
    %v1099 = vmul.f32 %v1079, %v1088
    %v1100 = vmul.f32 %v1080, %v1092
    %v1101 = vmul.f32 %v1081, %v1088
    %v1102 = vmul.f32 %v1082, %v1092
    %v1103 = vadd.f32 %v1027, %v1095
    %v1104 = vadd.f32 %v1028, %v1096
    %v1105 = vadd.f32 %v1029, %v1097
    %v1106 = vadd.f32 %v1030, %v1098
    %v1107 = vadd.f32 %v1031, %v1099
    %v1108 = vadd.f32 %v1032, %v1100
    %v1109 = vadd.f32 %v1033, %v1101
    %v1110 = vadd.f32 %v1034, %v1102
    %1111 = vrot.lane.b32.xlu0 %v919, 15
    %v1112 = vpop.permute.xlu0 %1111
    %1113 = vrot.lane.b32.xlu0 %v921, 15
    %v1114 = vpop.permute.xlu0 %1113
    %1115 = vrot.lane.b32.xlu0 %v923, 15
    %v1116 = vpop.permute.xlu0 %1115
    %1117 = vrot.lane.b32.xlu0 %v925, 15
    %v1118 = vpop.permute.xlu0 %1117
    %1119 = vrot.lane.b32.xlu0 %v920, 15
    %v1120 = vpop.permute.xlu0 %1119
    %1121 = vrot.lane.b32.xlu0 %v922, 15
    %v1122 = vpop.permute.xlu0 %1121
    %1123 = vrot.lane.b32.xlu0 %v924, 15
    %v1124 = vpop.permute.xlu0 %1123
    %1125 = vrot.lane.b32.xlu0 %v926, 15
    %v1126 = vpop.permute.xlu0 %1125
    %v1127 = vsel %vm256, %v1112, %v1120
    %v1128 = vsel %vm256, %v1114, %v1122
    %v1129 = vsel %vm256, %v1116, %v1124
    %v1130 = vsel %vm256, %v1118, %v1126
    %v1131 = vsel %vm256, %v1120, %v1112
    %v1132 = vsel %vm256, %v1122, %v1114
    %v1133 = vsel %vm256, %v1124, %v1116
    %v1134 = vsel %vm256, %v1126, %v1118
    %1135 = vset.pattern.permute.xlu0 2
    %1136 = vperm.xlu0 %1135, %v927
    %v1137 = vpop.permute.xlu0 %1136
    %1139 = vset.pattern.permute.xlu0 2
    %1140 = vperm.xlu0 %1139, %v928
    %v1141 = vpop.permute.xlu0 %1140
    %1143 = vset.pattern.permute.xlu0 2
    %1144 = vperm.xlu0 %1143, %v929
    %v1145 = vpop.permute.xlu0 %1144
    %1147 = vset.pattern.permute.xlu0 2
    %1148 = vperm.xlu0 %1147, %v930
    %v1149 = vpop.permute.xlu0 %1148
    %v1151 = vmul.f32 %v1131, %v1137
    %v1152 = vmul.f32 %v1127, %v1137
    %v1153 = vmul.f32 %v1132, %v1141
    %v1154 = vmul.f32 %v1128, %v1141
    %v1155 = vmul.f32 %v1133, %v1145
    %v1156 = vmul.f32 %v1129, %v1145
    %v1157 = vmul.f32 %v1134, %v1149
    %v1158 = vmul.f32 %v1130, %v1149
    %v1159 = vld [vmem:[%s289] ss:$8 sm:$0x3]
    %v1161 = vlaneseq
    %v1162 = vshrl.u32 %v1161, 7
    %v1163 = vsub.s32 0, %v1162
    %v1164 = vrot.slane %v1159, %v1163
    %v1165 = vlaneseq
    %v1166 = vshrl.u32 %v1165, 7
    %v1167 = vsub.s32 1, %v1166
    %v1168 = vrot.slane %v1159, %v1167
    %v1171 = vmul.f32 %v1151, %v1164
    %v1172 = vmul.f32 %v1152, %v1168
    %v1173 = vmul.f32 %v1153, %v1164
    %v1174 = vmul.f32 %v1154, %v1168
    %v1175 = vmul.f32 %v1155, %v1164
    %v1176 = vmul.f32 %v1156, %v1168
    %v1177 = vmul.f32 %v1157, %v1164
    %v1178 = vmul.f32 %v1158, %v1168
    %v1179 = vadd.f32 %v1103, %v1171
    %v1180 = vadd.f32 %v1104, %v1172
    %v1181 = vadd.f32 %v1105, %v1173
    %v1182 = vadd.f32 %v1106, %v1174
    %v1183 = vadd.f32 %v1107, %v1175
    %v1184 = vadd.f32 %v1108, %v1176
    %v1185 = vadd.f32 %v1109, %v1177
    %v1186 = vadd.f32 %v1110, %v1178
    %1187 = vrot.lane.b32.xlu0 %v919, 1
    %v1188 = vpop.permute.xlu0 %1187
    %1189 = vrot.lane.b32.xlu0 %v921, 1
    %v1190 = vpop.permute.xlu0 %1189
    %1191 = vrot.lane.b32.xlu0 %v923, 1
    %v1192 = vpop.permute.xlu0 %1191
    %1193 = vrot.lane.b32.xlu0 %v925, 1
    %v1194 = vpop.permute.xlu0 %1193
    %1195 = vrot.lane.b32.xlu0 %v920, 1
    %v1196 = vpop.permute.xlu0 %1195
    %1197 = vrot.lane.b32.xlu0 %v922, 1
    %v1198 = vpop.permute.xlu0 %1197
    %1199 = vrot.lane.b32.xlu0 %v924, 1
    %v1200 = vpop.permute.xlu0 %1199
    %1201 = vrot.lane.b32.xlu0 %v926, 1
    %v1202 = vpop.permute.xlu0 %1201
    %v1203 = vsel %vm334, %v1188, %v1196
    %v1204 = vsel %vm334, %v1190, %v1198
    %v1205 = vsel %vm334, %v1192, %v1200
    %v1206 = vsel %vm334, %v1194, %v1202
    %v1207 = vsel %vm334, %v1196, %v1188
    %v1208 = vsel %vm334, %v1198, %v1190
    %v1209 = vsel %vm334, %v1200, %v1192
    %v1210 = vsel %vm334, %v1202, %v1194
    %1211 = vset.pattern.permute.xlu0 3
    %1212 = vperm.xlu0 %1211, %v927
    %v1213 = vpop.permute.xlu0 %1212
    %1215 = vset.pattern.permute.xlu0 3
    %1216 = vperm.xlu0 %1215, %v928
    %v1217 = vpop.permute.xlu0 %1216
    %1219 = vset.pattern.permute.xlu0 3
    %1220 = vperm.xlu0 %1219, %v929
    %v1221 = vpop.permute.xlu0 %1220
    %1223 = vset.pattern.permute.xlu0 3
    %1224 = vperm.xlu0 %1223, %v930
    %v1225 = vpop.permute.xlu0 %1224
    %v1227 = vmul.f32 %v1207, %v1213
    %v1228 = vmul.f32 %v1203, %v1213
    %v1229 = vmul.f32 %v1208, %v1217
    %v1230 = vmul.f32 %v1204, %v1217
    %v1231 = vmul.f32 %v1209, %v1221
    %v1232 = vmul.f32 %v1205, %v1221
    %v1233 = vmul.f32 %v1210, %v1225
    %v1234 = vmul.f32 %v1206, %v1225
    %v1235 = vld [vmem:[%s367] ss:$8 sm:$0x3]
    %v1237 = vlaneseq
    %v1238 = vshrl.u32 %v1237, 7
    %v1239 = vsub.s32 0, %v1238
    %v1240 = vrot.slane %v1235, %v1239
    %v1241 = vlaneseq
    %v1242 = vshrl.u32 %v1241, 7
    %v1243 = vsub.s32 1, %v1242
    %v1244 = vrot.slane %v1235, %v1243
    %v1247 = vmul.f32 %v1227, %v1240
    %v1248 = vmul.f32 %v1228, %v1244
    %v1249 = vmul.f32 %v1229, %v1240
    %v1250 = vmul.f32 %v1230, %v1244
    %v1251 = vmul.f32 %v1231, %v1240
    %v1252 = vmul.f32 %v1232, %v1244
    %v1253 = vmul.f32 %v1233, %v1240
    %v1254 = vmul.f32 %v1234, %v1244
    %v1255 = vadd.f32 %v1179, %v1247
    %v1256 = vadd.f32 %v1180, %v1248
    %v1257 = vadd.f32 %v1181, %v1249
    %v1258 = vadd.f32 %v1182, %v1250
    %v1259 = vadd.f32 %v1183, %v1251
    %v1260 = vadd.f32 %v1184, %v1252
    %v1261 = vadd.f32 %v1185, %v1253
    %v1262 = vadd.f32 %v1186, %v1254
    %1263 = vrot.lane.b32.xlu0 %v919, 127
    %v1264 = vpop.permute.xlu0 %1263
    %1265 = vrot.lane.b32.xlu0 %v921, 127
    %v1266 = vpop.permute.xlu0 %1265
    %1267 = vrot.lane.b32.xlu0 %v923, 127
    %v1268 = vpop.permute.xlu0 %1267
    %1269 = vrot.lane.b32.xlu0 %v925, 127
    %v1270 = vpop.permute.xlu0 %1269
    %1271 = vrot.lane.b32.xlu0 %v920, 127
    %v1272 = vpop.permute.xlu0 %1271
    %1273 = vrot.lane.b32.xlu0 %v922, 127
    %v1274 = vpop.permute.xlu0 %1273
    %1275 = vrot.lane.b32.xlu0 %v924, 127
    %v1276 = vpop.permute.xlu0 %1275
    %1277 = vrot.lane.b32.xlu0 %v926, 127
    %v1278 = vpop.permute.xlu0 %1277
    %v1279 = vsel %vm412, %v1264, %v1272
    %v1280 = vsel %vm412, %v1266, %v1274
    %v1281 = vsel %vm412, %v1268, %v1276
    %v1282 = vsel %vm412, %v1270, %v1278
    %v1283 = vsel %vm412, %v1272, %v1264
    %v1284 = vsel %vm412, %v1274, %v1266
    %v1285 = vsel %vm412, %v1276, %v1268
    %v1286 = vsel %vm412, %v1278, %v1270
    %1287 = vset.pattern.permute.xlu0 5
    %1288 = vperm.xlu0 %1287, %v927
    %v1289 = vpop.permute.xlu0 %1288
    %1291 = vset.pattern.permute.xlu0 5
    %1292 = vperm.xlu0 %1291, %v928
    %v1293 = vpop.permute.xlu0 %1292
    %1295 = vset.pattern.permute.xlu0 5
    %1296 = vperm.xlu0 %1295, %v929
    %v1297 = vpop.permute.xlu0 %1296
    %1299 = vset.pattern.permute.xlu0 5
    %1300 = vperm.xlu0 %1299, %v930
    %v1301 = vpop.permute.xlu0 %1300
    %v1303 = vmul.f32 %v1279, %v1289
    %v1304 = vmul.f32 %v1283, %v1289
    %v1305 = vmul.f32 %v1280, %v1293
    %v1306 = vmul.f32 %v1284, %v1293
    %v1307 = vmul.f32 %v1281, %v1297
    %v1308 = vmul.f32 %v1285, %v1297
    %v1309 = vmul.f32 %v1282, %v1301
    %v1310 = vmul.f32 %v1286, %v1301
    %v1311 = vld [vmem:[%s445] ss:$8 sm:$0x3]
    %v1313 = vlaneseq
    %v1314 = vshrl.u32 %v1313, 7
    %v1315 = vsub.s32 0, %v1314
    %v1316 = vrot.slane %v1311, %v1315
    %v1317 = vlaneseq
    %v1318 = vshrl.u32 %v1317, 7
    %v1319 = vsub.s32 1, %v1318
    %v1320 = vrot.slane %v1311, %v1319
    %v1323 = vmul.f32 %v1303, %v1316
    %v1324 = vmul.f32 %v1304, %v1320
    %v1325 = vmul.f32 %v1305, %v1316
    %v1326 = vmul.f32 %v1306, %v1320
    %v1327 = vmul.f32 %v1307, %v1316
    %v1328 = vmul.f32 %v1308, %v1320
    %v1329 = vmul.f32 %v1309, %v1316
    %v1330 = vmul.f32 %v1310, %v1320
    %v1331 = vadd.f32 %v1255, %v1323
    %v1332 = vadd.f32 %v1256, %v1324
    %v1333 = vadd.f32 %v1257, %v1325
    %v1334 = vadd.f32 %v1258, %v1326
    %v1335 = vadd.f32 %v1259, %v1327
    %v1336 = vadd.f32 %v1260, %v1328
    %v1337 = vadd.f32 %v1261, %v1329
    %v1338 = vadd.f32 %v1262, %v1330
    %1339 = vrot.lane.b32.xlu0 %v919, 113
    %v1340 = vpop.permute.xlu0 %1339
    %1341 = vrot.lane.b32.xlu0 %v921, 113
    %v1342 = vpop.permute.xlu0 %1341
    %1343 = vrot.lane.b32.xlu0 %v923, 113
    %v1344 = vpop.permute.xlu0 %1343
    %1345 = vrot.lane.b32.xlu0 %v925, 113
    %v1346 = vpop.permute.xlu0 %1345
    %1347 = vrot.lane.b32.xlu0 %v920, 113
    %v1348 = vpop.permute.xlu0 %1347
    %1349 = vrot.lane.b32.xlu0 %v922, 113
    %v1350 = vpop.permute.xlu0 %1349
    %1351 = vrot.lane.b32.xlu0 %v924, 113
    %v1352 = vpop.permute.xlu0 %1351
    %1353 = vrot.lane.b32.xlu0 %v926, 113
    %v1354 = vpop.permute.xlu0 %1353
    %v1355 = vsel %vm490, %v1340, %v1348
    %v1356 = vsel %vm490, %v1342, %v1350
    %v1357 = vsel %vm490, %v1344, %v1352
    %v1358 = vsel %vm490, %v1346, %v1354
    %v1359 = vsel %vm490, %v1348, %v1340
    %v1360 = vsel %vm490, %v1350, %v1342
    %v1361 = vsel %vm490, %v1352, %v1344
    %v1362 = vsel %vm490, %v1354, %v1346
    %1363 = vset.pattern.permute.xlu0 6
    %1364 = vperm.xlu0 %1363, %v927
    %v1365 = vpop.permute.xlu0 %1364
    %1367 = vset.pattern.permute.xlu0 6
    %1368 = vperm.xlu0 %1367, %v928
    %v1369 = vpop.permute.xlu0 %1368
    %1371 = vset.pattern.permute.xlu0 6
    %1372 = vperm.xlu0 %1371, %v929
    %v1373 = vpop.permute.xlu0 %1372
    %1375 = vset.pattern.permute.xlu0 6
    %1376 = vperm.xlu0 %1375, %v930
    %v1377 = vpop.permute.xlu0 %1376
    %v1379 = vmul.f32 %v1355, %v1365
    %v1380 = vmul.f32 %v1359, %v1365
    %v1381 = vmul.f32 %v1356, %v1369
    %v1382 = vmul.f32 %v1360, %v1369
    %v1383 = vmul.f32 %v1357, %v1373
    %v1384 = vmul.f32 %v1361, %v1373
    %v1385 = vmul.f32 %v1358, %v1377
    %v1386 = vmul.f32 %v1362, %v1377
    %v1387 = vld [vmem:[%s523] ss:$8 sm:$0x3]
    %v1389 = vlaneseq
    %v1390 = vshrl.u32 %v1389, 7
    %v1391 = vsub.s32 0, %v1390
    %v1392 = vrot.slane %v1387, %v1391
    %v1393 = vlaneseq
    %v1394 = vshrl.u32 %v1393, 7
    %v1395 = vsub.s32 1, %v1394
    %v1396 = vrot.slane %v1387, %v1395
    %v1399 = vmul.f32 %v1379, %v1392
    %v1400 = vmul.f32 %v1380, %v1396
    %v1401 = vmul.f32 %v1381, %v1392
    %v1402 = vmul.f32 %v1382, %v1396
    %v1403 = vmul.f32 %v1383, %v1392
    %v1404 = vmul.f32 %v1384, %v1396
    %v1405 = vmul.f32 %v1385, %v1392
    %v1406 = vmul.f32 %v1386, %v1396
    %v1407 = vadd.f32 %v1331, %v1399
    %v1408 = vadd.f32 %v1332, %v1400
    %v1409 = vadd.f32 %v1333, %v1401
    %v1410 = vadd.f32 %v1334, %v1402
    %v1411 = vadd.f32 %v1335, %v1403
    %v1412 = vadd.f32 %v1336, %v1404
    %v1413 = vadd.f32 %v1337, %v1405
    %v1414 = vadd.f32 %v1338, %v1406
    %1415 = vrot.lane.b32.xlu0 %v919, 112
    %v1416 = vpop.permute.xlu0 %1415
    %1417 = vrot.lane.b32.xlu0 %v921, 112
    %v1418 = vpop.permute.xlu0 %1417
    %1419 = vrot.lane.b32.xlu0 %v923, 112
    %v1420 = vpop.permute.xlu0 %1419
    %1421 = vrot.lane.b32.xlu0 %v925, 112
    %v1422 = vpop.permute.xlu0 %1421
    %1423 = vrot.lane.b32.xlu0 %v920, 112
    %v1424 = vpop.permute.xlu0 %1423
    %1425 = vrot.lane.b32.xlu0 %v922, 112
    %v1426 = vpop.permute.xlu0 %1425
    %1427 = vrot.lane.b32.xlu0 %v924, 112
    %v1428 = vpop.permute.xlu0 %1427
    %1429 = vrot.lane.b32.xlu0 %v926, 112
    %v1430 = vpop.permute.xlu0 %1429
    %v1431 = vsel %vm568, %v1416, %v1424
    %v1432 = vsel %vm568, %v1418, %v1426
    %v1433 = vsel %vm568, %v1420, %v1428
    %v1434 = vsel %vm568, %v1422, %v1430
    %v1435 = vsel %vm568, %v1424, %v1416
    %v1436 = vsel %vm568, %v1426, %v1418
    %v1437 = vsel %vm568, %v1428, %v1420
    %v1438 = vsel %vm568, %v1430, %v1422
    %1439 = vset.pattern.permute.xlu0 7
    %1440 = vperm.xlu0 %1439, %v927
    %v1441 = vpop.permute.xlu0 %1440
    %1443 = vset.pattern.permute.xlu0 7
    %1444 = vperm.xlu0 %1443, %v928
    %v1445 = vpop.permute.xlu0 %1444
    %1447 = vset.pattern.permute.xlu0 7
    %1448 = vperm.xlu0 %1447, %v929
    %v1449 = vpop.permute.xlu0 %1448
    %1451 = vset.pattern.permute.xlu0 7
    %1452 = vperm.xlu0 %1451, %v930
    %v1453 = vpop.permute.xlu0 %1452
    %v1455 = vmul.f32 %v1431, %v1441
    %v1456 = vmul.f32 %v1435, %v1441
    %v1457 = vmul.f32 %v1432, %v1445
    %v1458 = vmul.f32 %v1436, %v1445
    %v1459 = vmul.f32 %v1433, %v1449
    %v1460 = vmul.f32 %v1437, %v1449
    %v1461 = vmul.f32 %v1434, %v1453
    %v1462 = vmul.f32 %v1438, %v1453
    %v1463 = vld [vmem:[%s601] ss:$8 sm:$0x3]
    %v1465 = vlaneseq
    %v1466 = vshrl.u32 %v1465, 7
    %v1467 = vsub.s32 0, %v1466
    %v1468 = vrot.slane %v1463, %v1467
    %v1469 = vlaneseq
    %v1470 = vshrl.u32 %v1469, 7
    %v1471 = vsub.s32 1, %v1470
    %v1472 = vrot.slane %v1463, %v1471
    %v1475 = vmul.f32 %v1455, %v1468
    %v1476 = vmul.f32 %v1456, %v1472
    %v1477 = vmul.f32 %v1457, %v1468
    %v1478 = vmul.f32 %v1458, %v1472
    %v1479 = vmul.f32 %v1459, %v1468
    %v1480 = vmul.f32 %v1460, %v1472
    %v1481 = vmul.f32 %v1461, %v1468
    %v1482 = vmul.f32 %v1462, %v1472
    %v1483 = vadd.f32 %v1407, %v1475
    %v1484 = vadd.f32 %v1408, %v1476
    %v1485 = vadd.f32 %v1409, %v1477
    %v1486 = vadd.f32 %v1410, %v1478
    %v1487 = vadd.f32 %v1411, %v1479
    %v1488 = vadd.f32 %v1412, %v1480
    %v1489 = vadd.f32 %v1413, %v1481
    %v1490 = vadd.f32 %v1414, %v1482
    %1491 = vrot.lane.b32.xlu0 %v919, 111
    %v1492 = vpop.permute.xlu0 %1491
    %1493 = vrot.lane.b32.xlu0 %v921, 111
    %v1494 = vpop.permute.xlu0 %1493
    %1495 = vrot.lane.b32.xlu0 %v923, 111
    %v1496 = vpop.permute.xlu0 %1495
    %1497 = vrot.lane.b32.xlu0 %v925, 111
    %v1498 = vpop.permute.xlu0 %1497
    %1499 = vrot.lane.b32.xlu0 %v920, 111
    %v1500 = vpop.permute.xlu0 %1499
    %1501 = vrot.lane.b32.xlu0 %v922, 111
    %v1502 = vpop.permute.xlu0 %1501
    %1503 = vrot.lane.b32.xlu0 %v924, 111
    %v1504 = vpop.permute.xlu0 %1503
    %1505 = vrot.lane.b32.xlu0 %v926, 111
    %v1506 = vpop.permute.xlu0 %1505
    %v1507 = vsel %vm646, %v1492, %v1500
    %v1508 = vsel %vm646, %v1494, %v1502
    %v1509 = vsel %vm646, %v1496, %v1504
    %v1510 = vsel %vm646, %v1498, %v1506
    %v1511 = vsel %vm646, %v1500, %v1492
    %v1512 = vsel %vm646, %v1502, %v1494
    %v1513 = vsel %vm646, %v1504, %v1496
    %v1514 = vsel %vm646, %v1506, %v1498
    %1515 = vset.pattern.permute.xlu0 8
    %1516 = vperm.xlu0 %1515, %v927
    %v1517 = vpop.permute.xlu0 %1516
    %1519 = vset.pattern.permute.xlu0 8
    %1520 = vperm.xlu0 %1519, %v928
    %v1521 = vpop.permute.xlu0 %1520
    %1523 = vset.pattern.permute.xlu0 8
    %1524 = vperm.xlu0 %1523, %v929
    %v1525 = vpop.permute.xlu0 %1524
    %1527 = vset.pattern.permute.xlu0 8
    %1528 = vperm.xlu0 %1527, %v930
    %v1529 = vpop.permute.xlu0 %1528
    %v1531 = vmul.f32 %v1507, %v1517
    %v1532 = vmul.f32 %v1511, %v1517
    %v1533 = vmul.f32 %v1508, %v1521
    %v1534 = vmul.f32 %v1512, %v1521
    %v1535 = vmul.f32 %v1509, %v1525
    %v1536 = vmul.f32 %v1513, %v1525
    %v1537 = vmul.f32 %v1510, %v1529
    %v1538 = vmul.f32 %v1514, %v1529
    %v1539 = vld [vmem:[%s679] ss:$8 sm:$0x3]
    %v1541 = vlaneseq
    %v1542 = vshrl.u32 %v1541, 7
    %v1543 = vsub.s32 0, %v1542
    %v1544 = vrot.slane %v1539, %v1543
    %v1545 = vlaneseq
    %v1546 = vshrl.u32 %v1545, 7
    %v1547 = vsub.s32 1, %v1546
    %v1548 = vrot.slane %v1539, %v1547
    %v1551 = vmul.f32 %v1531, %v1544
    %v1552 = vmul.f32 %v1532, %v1548
    %v1553 = vmul.f32 %v1533, %v1544
    %v1554 = vmul.f32 %v1534, %v1548
    %v1555 = vmul.f32 %v1535, %v1544
    %v1556 = vmul.f32 %v1536, %v1548
    %v1557 = vmul.f32 %v1537, %v1544
    %v1558 = vmul.f32 %v1538, %v1548
    %v1559 = vadd.f32 %v1483, %v1551
    %v1560 = vadd.f32 %v1484, %v1552
    %v1561 = vadd.f32 %v1485, %v1553
    %v1562 = vadd.f32 %v1486, %v1554
    %v1563 = vadd.f32 %v1487, %v1555
    %v1564 = vadd.f32 %v1488, %v1556
    %v1565 = vadd.f32 %v1489, %v1557
    %v1566 = vadd.f32 %v1490, %v1558
    %v1567 = vadd.f32 %v1559, %v711
    %v1568 = vadd.f32 %v1560, %v711
    %v1569 = vadd.f32 %v1561, %v716
    %v1570 = vadd.f32 %v1562, %v716
    %v1571 = vadd.f32 %v1563, %v721
    %v1572 = vadd.f32 %v1564, %v721
    %v1573 = vadd.f32 %v1565, %v726
    %v1574 = vadd.f32 %v1566, %v726
    %vm1575 = vcmp.ge.f32.partialorder %v1567, 0.0
    %vm1576 = vcmp.ge.f32.partialorder %v1568, 0.0
    %vm1577 = vcmp.ge.f32.partialorder %v1569, 0.0
    %vm1578 = vcmp.ge.f32.partialorder %v1570, 0.0
    %vm1579 = vcmp.ge.f32.partialorder %v1571, 0.0
    %vm1580 = vcmp.ge.f32.partialorder %v1572, 0.0
    %vm1581 = vcmp.ge.f32.partialorder %v1573, 0.0
    %vm1582 = vcmp.ge.f32.partialorder %v1574, 0.0
    %v1583 = vmul.f32 %v1567, 0.1
    %v1584 = vmul.f32 %v1568, 0.1
    %v1585 = vmul.f32 %v1569, 0.1
    %v1586 = vmul.f32 %v1570, 0.1
    %v1587 = vmul.f32 %v1571, 0.1
    %v1588 = vmul.f32 %v1572, 0.1
    %v1589 = vmul.f32 %v1573, 0.1
    %v1590 = vmul.f32 %v1574, 0.1
    %v1591 = vsel %vm1575, %v1567, %v1583
    %v1592 = vsel %vm1576, %v1568, %v1584
    %v1593 = vsel %vm1577, %v1569, %v1585
    %v1594 = vsel %vm1578, %v1570, %v1586
    %v1595 = vsel %vm1579, %v1571, %v1587
    %v1596 = vsel %vm1580, %v1572, %v1588
    %v1597 = vsel %vm1581, %v1573, %v1589
    %v1598 = vsel %vm1582, %v1574, %v1590
    %1599 = vmatprep.subr.mxu0 0.0
    %1600 = vmatpush1.msra.mxu0 0.0
    %1601 = vmatprep.subr.mxu0 0.0
    %1602 = vmatpush1.msra.mxu0 0.0
    %1603 = vmatprep.subr.mxu0 0.0
    %1604 = vmatpush1.msra.mxu0 0.0
    %1605 = vmatprep.subr.mxu0 0.0
    %1606 = vmatpush1.msra.mxu0 0.0
    %1607 = vmatprep.subr.mxu0 0.0
    %1608 = vmatpush1.msra.mxu0 0.0
    %1609 = vmatprep.subr.mxu0 0.0
    %1610 = vmatpush1.msra.mxu0 0.0
    %1611 = vmatprep.subr.mxu0 0.0
    %1612 = vmatpush1.msra.mxu0 0.0
    %1613 = vmatprep.subr.mxu0 0.0
    %1614 = vmatpush1.msra.mxu0 0.0
    %1615 = vmatprep.subr.mxu0 0.0
    %1616 = vmatpush1.msra.mxu0 0.0
    %1617 = vmatprep.subr.mxu0 0.0
    %1618 = vmatpush1.msra.mxu0 0.0
    %1619 = vmatprep.subr.mxu0 0.0
    %1620 = vmatpush1.msra.mxu0 0.0
    %1621 = vmatprep.subr.mxu0 0.0
    %1622 = vmatpush1.msra.mxu0 0.0
    %1623 = vmatprep.subr.mxu0 %v1598
    %1624 = vmatpush1.msra.mxu0 %v1597
    %1625 = vmatprep.subr.mxu0 %v1596
    %1626 = vmatpush1.msra.mxu0 %v1595
    %1627 = vmatprep.subr.mxu0 %v1594
    %1628 = vmatpush1.msra.mxu0 %v1593
    %1629 = vmatprep.subr.mxu0 %v1592
    %1630 = vmatpush1.msra.mxu0 %v1591
    %1631 = vmatprep.subr.mxu0 0.0
    %1632 = vmatpush2.msra.mxu0 0.0
    %1633 = vmatprep.subr.mxu0 0.0
    %1634 = vmatpush2.msra.mxu0 0.0
    %1635 = vmatprep.subr.mxu0 0.0
    %1636 = vmatpush2.msra.mxu0 0.0
    %1637 = vmatprep.subr.mxu0 0.0
    %1638 = vmatpush2.msra.mxu0 0.0
    %1639 = vmatprep.subr.mxu0 0.0
    %1640 = vmatpush2.msra.mxu0 0.0
    %1641 = vmatprep.subr.mxu0 0.0
    %1642 = vmatpush2.msra.mxu0 0.0
    %1643 = vmatprep.subr.mxu0 0.0
    %1644 = vmatpush2.msra.mxu0 0.0
    %1645 = vmatprep.subr.mxu0 0.0
    %1646 = vmatpush2.msra.mxu0 0.0
    %1647 = vmatprep.subr.mxu0 0.0
    %1648 = vmatpush2.msra.mxu0 0.0
    %1649 = vmatprep.subr.mxu0 0.0
    %1650 = vmatpush2.msra.mxu0 0.0
    %1651 = vmatprep.subr.mxu0 0.0
    %1652 = vmatpush2.msra.mxu0 0.0
    %1653 = vmatprep.subr.mxu0 0.0
    %1654 = vmatpush2.msra.mxu0 0.0
    %1655 = vmatprep.subr.mxu0 0.0
    %1656 = vmatpush2.msra.mxu0 0.0
    %1657 = vmatprep.subr.mxu0 0.0
    %1658 = vmatpush2.msra.mxu0 0.0
    %1659 = vmatprep.subr.mxu0 0.0
    %1660 = vmatpush2.msra.mxu0 0.0
    %1661 = vmatprep.subr.mxu0 0.0
    %1662 = vmatpush2.msra.mxu0 0.0
    %1663 = vmatprep.mubr.f32.mxu0 0.0
    %1664 = vmatmul.mubr.f32.gmra.mxu0 %v778
    %v1665 = vpop.f32.mrf.mxu0
    %v1666 = vadd.f32 %v762, %v1665
    %v1667 = vpop.f32.mrf.mxu0
    %v1668 = vadd.f32 %v762, %v1667
    %1669 = vmatprep.mubr.f32.mxu0 0.0
    %1670 = vmatmul.mubr.f32.gmra.mxu0 %v781
    %v1671 = vpop.f32.mrf.mxu0
    %v1672 = vadd.f32 %v766, %v1671
    %v1673 = vpop.f32.mrf.mxu0
    %v1674 = vadd.f32 %v766, %v1673
    %1675 = vmatprep.mubr.f32.mxu0 0.0
    %1676 = vmatmul.mubr.f32.gmra.mxu0 %v784
    %v1677 = vpop.f32.mrf.mxu0
    %v1678 = vadd.f32 %v770, %v1677
    %v1679 = vpop.f32.mrf.mxu0
    %v1680 = vadd.f32 %v770, %v1679
    %1681 = vmatprep.mubr.f32.mxu0 0.0
    %1682 = vmatmul.mubr.f32.gmra.mxu0 %v787
    %v1683 = vpop.f32.mrf.mxu0
    %v1684 = vadd.f32 %v774, %v1683
    %v1685 = vpop.f32.mrf.mxu0
    %v1686 = vadd.f32 %v774, %v1685
    %1687 = vdwg.mxu0
    %vm1688 = vcmp.ge.f32.partialorder %v1666, 0.0
    %vm1689 = vcmp.ge.f32.partialorder %v1668, 0.0
    %vm1690 = vcmp.ge.f32.partialorder %v1672, 0.0
    %vm1691 = vcmp.ge.f32.partialorder %v1674, 0.0
    %vm1692 = vcmp.ge.f32.partialorder %v1678, 0.0
    %vm1693 = vcmp.ge.f32.partialorder %v1680, 0.0
    %vm1694 = vcmp.ge.f32.partialorder %v1684, 0.0
    %vm1695 = vcmp.ge.f32.partialorder %v1686, 0.0
    %v1696 = vmul.f32 %v1666, 0.1
    %v1697 = vmul.f32 %v1668, 0.1
    %v1698 = vmul.f32 %v1672, 0.1
    %v1699 = vmul.f32 %v1674, 0.1
    %v1700 = vmul.f32 %v1678, 0.1
    %v1701 = vmul.f32 %v1680, 0.1
    %v1702 = vmul.f32 %v1684, 0.1
    %v1703 = vmul.f32 %v1686, 0.1
    %v1704 = vsel %vm1688, %v1666, %v1696
    %v1705 = vsel %vm1689, %v1668, %v1697
    %v1706 = vsel %vm1690, %v1672, %v1698
    %v1707 = vsel %vm1691, %v1674, %v1699
    %v1708 = vsel %vm1692, %v1678, %v1700
    %v1709 = vsel %vm1693, %v1680, %v1701
    %v1710 = vsel %vm1694, %v1684, %v1702
    %v1711 = vsel %vm1695, %v1686, %v1703
    %v1712 = vadd.f32 %v1704, %v919
    %v1713 = vadd.f32 %v1705, %v920
    %v1714 = vadd.f32 %v1706, %v921
    %v1715 = vadd.f32 %v1707, %v922
    %v1716 = vadd.f32 %v1708, %v923
    %v1717 = vadd.f32 %v1709, %v924
    %v1718 = vadd.f32 %v1710, %v925
    %v1719 = vadd.f32 %v1711, %v926
    %s1720 = scalar_lea.vmem [#allocation5], 64
    %1721 = vst [vmem:[%s1720] sm:$0xff] %v1712
    %1722 = vst [vmem:[%s1720 + $0x8] sm:$0xff] %v1713
    %1723 = vst [vmem:[%s1720 + $0x10] sm:$0xff] %v1714
    %1724 = vst [vmem:[%s1720 + $0x18] sm:$0xff] %v1715
    %1725 = vst [vmem:[%s1720 + $0x20] sm:$0xff] %v1716
    %1726 = vst [vmem:[%s1720 + $0x28] sm:$0xff] %v1717
    %1727 = vst [vmem:[%s1720 + $0x30] sm:$0xff] %v1718
    %1728 = vst [vmem:[%s1720 + $0x38] sm:$0xff] %v1719
    // Predicated region
    $region26: #{tpu_custom_call.1} parent=1 // pred_check
      _
    $region27: #{tpu_custom_call.1} parent=1 // pred_check_branch
      %1730 = sbr.rel (0) target = $region29
    $region28: #{tpu_custom_call.1} parent=1 // pred_region
      %s1732 = ssub.s32 2048, 2048
      %1733 = vsyncadd [#allocation4], %s1732
      %s1734 = sshll.u32 [#allocation5], 4
      %s1735 = int_to_ptr.vmem [resolvable:$true] %s1734
      %1740 = dma.vmem_to_hbm [thread:$0]  %s1735, 2048, %s5, [#allocation4], 256, 256, 16
    $region29: #{tpu_custom_call.1} parent=1 // pred_fallthru
      _
    // Predicated region
    $region30: #{tpu_custom_call.1} parent=1 // pred_check
      _
    $region31: #{tpu_custom_call.1} parent=1 // pred_check_branch
      %1742 = sbr.rel (0) target = $region33
    $region32: #{tpu_custom_call.1} parent=1 // pred_region
      %1743 = dma.done [#allocation4], 2048
    $region33: #{tpu_custom_call.1} parent=1 // pred_fallthru
      _
    %1744 = vsyncpa [#allocation3], 1
    %1745 = vsyncpa [#allocation4], 1

</llo_original>
